<compile_context>
chip_gen: v7x
topology: tpu7x:2x2x1
jax: 0.10.0
libtpu: 0.0.40
codegen_flags: <defaults>
</compile_context>

<pallas_src>
import functools

import jax
import jax.numpy as jnp
import numpy as np
from jax.experimental import pallas as pl
from jax.experimental.pallas import tpu as pltpu


def _stmeta_gcn_kernel(adj_ref, att_ref, g_ref, x_ref, w_ref, b_ref, out_ref,
                       *, cheb_k, bt):
    # adj_ref : (bt, N, N)        att_ref : (bt, N, N)
    # g_ref   : (max(K-1,1),N,N)  x_ref   : (bt, N, din)
    # w_ref   : (K, din, dpad)    b_ref   : (1, dpad)
    # out_ref : (bt, N, dpad)
    bias = b_ref[...]                              # (1, dpad)
    w = [w_ref[k] for k in range(cheb_k)]          # load W once per grid step

    for j in range(bt):                            # static unroll over batch tile
        x_j = x_ref[j]                             # (N, din)
        # U = adj_j @ (x_j @ W_0) + sum_k G_k @ (x_j @ W_{k+1})
        y0 = jnp.dot(x_j, w[0], preferred_element_type=jnp.float32)
        u = jnp.dot(adj_ref[j], y0, preferred_element_type=jnp.float32)
        for k in range(cheb_k - 1):
            yk = jnp.dot(x_j, w[k + 1], preferred_element_type=jnp.float32)
            u = u + jnp.dot(g_ref[k], yk, preferred_element_type=jnp.float32)
        # Final attention matmul + bias; lane-dense (N, dpad) full-vst store.
        o = jnp.dot(att_ref[j], u, preferred_element_type=jnp.float32) + bias
        out_ref[j] = o.astype(out_ref.dtype)


def stmeta_gcn(G, x, meta_adj, meta_att, W, bias, *, cheb_k, bt=None):
    B, N, dim_in = x.shape
    dim_out = W.shape[1]
    assert W.shape[0] == cheb_k * dim_in

    n_g = max(cheb_k - 1, 1)             # only cheb_k-1 shared supports are used
    G_in = G[:n_g]

    # Lane-dense output: pad dim_out (and W / bias) up to a multiple of 128.
    # Padded W / bias columns are zero, so padded output columns are zero.
    dpad = ((dim_out + 127) // 128) * 128
    W3 = W.reshape(cheb_k, dim_in, dim_out)
    if dpad != dim_out:
        W3 = jnp.pad(W3, ((0, 0), (0, 0), (0, dpad - dim_out)))
        b_p = jnp.pad(bias, (0, dpad - dim_out))
    else:
        b_p = bias
    b_p = b_p.reshape(1, dpad)

    # Per-grid-step VMEM footprint (auto-pipeline double-buffers every block).
    def tile_bytes(t):
        return 4 * (2 * (2 * t * N * N)                       # adj + att
                    + 2 * n_g * N * N                         # G (invariant)
                    + 2 * t * N * dim_in                      # x
                    + 2 * cheb_k * dim_in * dpad + 2 * dpad   # W + bias
                    + 2 * t * N * dpad                        # out
                    + 2 * N * dpad)                           # in-kernel f32 temps

    # Batch-tile size: amortize the ~0.35us per-grid-step overhead, keep >= 2
    # grid steps for megacore sharding, stay inside a conservative VMEM budget.
    if bt is None:
        bt = 1
        for cand in (8, 4, 2):
            if B % cand == 0 and B // cand >= 2 and tile_bytes(cand) <= 40 * 2**20:
                bt = cand
                break
    assert B % bt == 0
    n_tiles = B // bt

    # Scoped-VMEM limit: generous but clamped to 64 MiB so it is valid on v7x
    # as well as v5e/v6e.
    vmem_limit = int(min(64 * 2**20, max(32 * 2**20, 2 * tile_bytes(bt))))

    flops = B * (2 * N * dim_in * dpad * cheb_k          # x @ W_k
                 + 2 * N * N * dpad * cheb_k             # adj@ / G@ supports
                 + 2 * N * N * dpad)                     # att @ U
    bytes_accessed = 4 * (2 * B * N * N + n_g * N * N + B * N * dim_in
                          + B * N * dpad + cheb_k * dim_in * dpad + dpad)

    kernel = functools.partial(_stmeta_gcn_kernel, cheb_k=cheb_k, bt=bt)

    out_padded = pl.pallas_call(
        kernel,
        out_shape=jax.ShapeDtypeStruct((B, N, dpad), x.dtype),
        grid_spec=pltpu.PrefetchScalarGridSpec(
            num_scalar_prefetch=0,
            grid=(n_tiles,),
            in_specs=[
                pl.BlockSpec((bt, N, N), lambda g: (g, 0, 0)),              # meta_adj
                pl.BlockSpec((bt, N, N), lambda g: (g, 0, 0)),              # meta_att
                pl.BlockSpec((n_g, N, N), lambda g: (0, 0, 0)),             # G (invariant)
                pl.BlockSpec((bt, N, dim_in), lambda g: (g, 0, 0)),         # x
                pl.BlockSpec((cheb_k, dim_in, dpad), lambda g: (0, 0, 0)),  # W (invariant)
                pl.BlockSpec((1, dpad), lambda g: (0, 0)),                  # bias (invariant)
            ],
            out_specs=pl.BlockSpec((bt, N, dpad), lambda g: (g, 0, 0)),
        ),
        compiler_params=pltpu.CompilerParams(
            dimension_semantics=("parallel",),
            vmem_limit_bytes=vmem_limit),
        cost_estimate=pl.CostEstimate(flops=flops, transcendentals=0,
                                      bytes_accessed=bytes_accessed),
    )(meta_adj, meta_att, G_in, x, W3, b_p)

    # Drop the lane padding (padded W/bias columns are zero -> exact result).
    return out_padded[..., :dim_out]


def stmeta_gcn_reference(G, x, meta_adj, meta_att, W, bias, *, cheb_k):
    """Pure-JAX mirror of the torch forward (meta_adj set, 3-D G)."""
    supports = []
    s = jnp.einsum('bij,bjp->bip', meta_adj, x)
    s = jnp.einsum('bij,bjp->bip', meta_att, s)
    supports.append(s)
    for k in range(cheb_k - 1):
        s = jnp.einsum('ij,bjp->bip', G[k], x)
        s = jnp.einsum('bij,bjp->bip', meta_att, s)
        supports.append(s)
    cat = jnp.concatenate(supports, axis=-1)
    return jnp.einsum('bip,pq->biq', cat, W) + bias


if __name__ == "__main__":
    # Small, module-consistent shapes (B=4 exercises the bt=2 batch-tile path
    # while keeping 2 parallel grid steps).
    B, N, dim_in, dim_out, cheb_k = 4, 16, 4, 32, 3

    key = jax.random.PRNGKey(0)
    k_x, k_g, k_adj, k_att, k_w = jax.random.split(key, 5)

    x = jax.random.normal(k_x, (B, N, dim_in), dtype=jnp.float32)
    G = jax.random.normal(k_g, (cheb_k, N, N), dtype=jnp.float32)
    meta_adj = jax.random.normal(k_adj, (B, N, N), dtype=jnp.float32)
    meta_att = jax.nn.softmax(
        jax.random.normal(k_att, (B, N, N), dtype=jnp.float32), axis=-1)

    # Deterministic parameter init (mirrors nn.init.xavier_normal_ / constant 0).
    fan_in, fan_out = cheb_k * dim_in, dim_out
    std = float(np.sqrt(2.0 / (fan_in + fan_out)))
    W = jax.random.normal(k_w, (fan_in, fan_out), dtype=jnp.float32) * std
    bias = jnp.zeros((dim_out,), dtype=jnp.float32)

    out = stmeta_gcn(G, x, meta_adj, meta_att, W, bias, cheb_k=cheb_k)
    out = jax.block_until_ready(out)

    ref = stmeta_gcn_reference(G, x, meta_adj, meta_att, W, bias, cheb_k=cheb_k)
    np.testing.assert_allclose(np.asarray(out), np.asarray(ref),
                               rtol=1e-4, atol=1e-4)

    print("KERNEL_OK")
</pallas_src>

<mosaic_0001>
module attributes {stable_mosaic.version = 11 : i64} {
  func.func @_stmeta_gcn_kernel(%arg0: i32, %arg1: memref<2x16x16xf32, #tpu.memory_space<vmem>>, %arg2: memref<2x16x16xf32, #tpu.memory_space<vmem>>, %arg3: memref<2x16x16xf32, #tpu.memory_space<vmem>>, %arg4: memref<2x16x4xf32, #tpu.memory_space<vmem>>, %arg5: memref<3x4x128xf32, #tpu.memory_space<vmem>>, %arg6: memref<1x128xf32, #tpu.memory_space<vmem>>, %arg7: memref<2x16x128xf32, #tpu.memory_space<vmem>>) attributes {dimension_semantics = [#tpu.dimension_semantics<parallel>], iteration_bounds = array<i64: 2>, scalar_prefetch = 0 : i64, scratch_operands = 0 : i64, tpu.core_type = #tpu.core_type<tc>, window_params = [{transform_indices = @transform_0, window_bounds = array<i64: 2, 16, 16>}, {transform_indices = @transform_1, window_bounds = array<i64: 2, 16, 16>}, {pipeline_mode = #tpu.pipeline_mode<synchronous>, transform_indices = @transform_2, window_bounds = array<i64: 2, 16, 16>}, {transform_indices = @transform_3, window_bounds = array<i64: 2, 16, 4>}, {pipeline_mode = #tpu.pipeline_mode<synchronous>, transform_indices = @transform_4, window_bounds = array<i64: 3, 4, 128>}, {pipeline_mode = #tpu.pipeline_mode<synchronous>, transform_indices = @transform_5, window_bounds = array<i64: 1, 128>}, {transform_indices = @transform_6, window_bounds = array<i64: 2, 16, 128>}]} {
    %c0 = arith.constant 0 : index
    %c0_0 = arith.constant 0 : index
    %0 = vector.load %arg6[%c0, %c0_0] : memref<1x128xf32, #tpu.memory_space<vmem>>, vector<1x128xf32>
    %c0_1 = arith.constant 0 : index
    %c0_2 = arith.constant 0 : index
    %c0_3 = arith.constant 0 : index
    %1 = vector.load %arg5[%c0_1, %c0_2, %c0_3] : memref<3x4x128xf32, #tpu.memory_space<vmem>>, vector<1x4x128xf32>
    %2 = vector.shape_cast %1 : vector<1x4x128xf32> to vector<4x128xf32>
    %c1 = arith.constant 1 : index
    %c0_4 = arith.constant 0 : index
    %c0_5 = arith.constant 0 : index
    %3 = vector.load %arg5[%c1, %c0_4, %c0_5] : memref<3x4x128xf32, #tpu.memory_space<vmem>>, vector<1x4x128xf32>
    %4 = vector.shape_cast %3 : vector<1x4x128xf32> to vector<4x128xf32>
    %c2 = arith.constant 2 : index
    %c0_6 = arith.constant 0 : index
    %c0_7 = arith.constant 0 : index
    %5 = vector.load %arg5[%c2, %c0_6, %c0_7] : memref<3x4x128xf32, #tpu.memory_space<vmem>>, vector<1x4x128xf32>
    %6 = vector.shape_cast %5 : vector<1x4x128xf32> to vector<4x128xf32>
    %c0_8 = arith.constant 0 : index
    %c0_9 = arith.constant 0 : index
    %c0_10 = arith.constant 0 : index
    %7 = vector.load %arg4[%c0_8, %c0_9, %c0_10] : memref<2x16x4xf32, #tpu.memory_space<vmem>>, vector<1x16x4xf32>
    %8 = vector.shape_cast %7 : vector<1x16x4xf32> to vector<16x4xf32>
    %cst = arith.constant dense<0.000000e+00> : vector<16x128xf32>
    %9 = tpu.matmul %8, %2, %cst {dimension_numbers = #tpu.dot_dimension_numbers<[1], [0], [0], [1], [0, 0, 1, 1], [], []>} : vector<16x4xf32>, vector<4x128xf32>, vector<16x128xf32> -> vector<16x128xf32>
    %c0_11 = arith.constant 0 : index
    %c0_12 = arith.constant 0 : index
    %c0_13 = arith.constant 0 : index
    %10 = vector.load %arg1[%c0_11, %c0_12, %c0_13] : memref<2x16x16xf32, #tpu.memory_space<vmem>>, vector<1x16x16xf32>
    %11 = vector.shape_cast %10 : vector<1x16x16xf32> to vector<16x16xf32>
    %cst_14 = arith.constant dense<0.000000e+00> : vector<16x128xf32>
    %12 = tpu.matmul %11, %9, %cst_14 {dimension_numbers = #tpu.dot_dimension_numbers<[1], [0], [0], [1], [0, 0, 1, 1], [], []>} : vector<16x16xf32>, vector<16x128xf32>, vector<16x128xf32> -> vector<16x128xf32>
    %cst_15 = arith.constant dense<0.000000e+00> : vector<16x128xf32>
    %13 = tpu.matmul %8, %4, %cst_15 {dimension_numbers = #tpu.dot_dimension_numbers<[1], [0], [0], [1], [0, 0, 1, 1], [], []>} : vector<16x4xf32>, vector<4x128xf32>, vector<16x128xf32> -> vector<16x128xf32>
    %c0_16 = arith.constant 0 : index
    %c0_17 = arith.constant 0 : index
    %c0_18 = arith.constant 0 : index
    %14 = vector.load %arg3[%c0_16, %c0_17, %c0_18] : memref<2x16x16xf32, #tpu.memory_space<vmem>>, vector<1x16x16xf32>
    %15 = vector.shape_cast %14 : vector<1x16x16xf32> to vector<16x16xf32>
    %cst_19 = arith.constant dense<0.000000e+00> : vector<16x128xf32>
    %16 = tpu.matmul %15, %13, %cst_19 {dimension_numbers = #tpu.dot_dimension_numbers<[1], [0], [0], [1], [0, 0, 1, 1], [], []>} : vector<16x16xf32>, vector<16x128xf32>, vector<16x128xf32> -> vector<16x128xf32>
    %17 = arith.addf %12, %16 : vector<16x128xf32>
    %cst_20 = arith.constant dense<0.000000e+00> : vector<16x128xf32>
    %18 = tpu.matmul %8, %6, %cst_20 {dimension_numbers = #tpu.dot_dimension_numbers<[1], [0], [0], [1], [0, 0, 1, 1], [], []>} : vector<16x4xf32>, vector<4x128xf32>, vector<16x128xf32> -> vector<16x128xf32>
    %c1_21 = arith.constant 1 : index
    %c0_22 = arith.constant 0 : index
    %c0_23 = arith.constant 0 : index
    %19 = vector.load %arg3[%c1_21, %c0_22, %c0_23] : memref<2x16x16xf32, #tpu.memory_space<vmem>>, vector<1x16x16xf32>
    %20 = vector.shape_cast %19 : vector<1x16x16xf32> to vector<16x16xf32>
    %cst_24 = arith.constant dense<0.000000e+00> : vector<16x128xf32>
    %21 = tpu.matmul %20, %18, %cst_24 {dimension_numbers = #tpu.dot_dimension_numbers<[1], [0], [0], [1], [0, 0, 1, 1], [], []>} : vector<16x16xf32>, vector<16x128xf32>, vector<16x128xf32> -> vector<16x128xf32>
    %22 = arith.addf %17, %21 : vector<16x128xf32>
    %c0_25 = arith.constant 0 : index
    %c0_26 = arith.constant 0 : index
    %c0_27 = arith.constant 0 : index
    %23 = vector.load %arg2[%c0_25, %c0_26, %c0_27] : memref<2x16x16xf32, #tpu.memory_space<vmem>>, vector<1x16x16xf32>
    %24 = vector.shape_cast %23 : vector<1x16x16xf32> to vector<16x16xf32>
    %cst_28 = arith.constant dense<0.000000e+00> : vector<16x128xf32>
    %25 = tpu.matmul %24, %22, %cst_28 {dimension_numbers = #tpu.dot_dimension_numbers<[1], [0], [0], [1], [0, 0, 1, 1], [], []>} : vector<16x16xf32>, vector<16x128xf32>, vector<16x128xf32> -> vector<16x128xf32>
    %26 = vector.broadcast %0 : vector<1x128xf32> to vector<16x128xf32>
    %27 = arith.addf %25, %26 : vector<16x128xf32>
    %c0_29 = arith.constant 0 : index
    %c0_30 = arith.constant 0 : index
    %c0_31 = arith.constant 0 : index
    %28 = vector.load %arg7[%c0_29, %c0_30, %c0_31] : memref<2x16x128xf32, #tpu.memory_space<vmem>>, vector<1x16x128xf32>
    %29 = vector.shape_cast %28 : vector<1x16x128xf32> to vector<16x128xf32>
    %30 = vector.shape_cast %27 : vector<16x128xf32> to vector<1x16x128xf32>
    tpu.vector_store %arg7[%c0_29, %c0_30, %c0_31], %30 {strides = array<i32>} : memref<2x16x128xf32, #tpu.memory_space<vmem>>, vector<1x16x128xf32>,
    %c1_32 = arith.constant 1 : index
    %c0_33 = arith.constant 0 : index
    %c0_34 = arith.constant 0 : index
    %31 = vector.load %arg4[%c1_32, %c0_33, %c0_34] : memref<2x16x4xf32, #tpu.memory_space<vmem>>, vector<1x16x4xf32>
    %32 = vector.shape_cast %31 : vector<1x16x4xf32> to vector<16x4xf32>
    %cst_35 = arith.constant dense<0.000000e+00> : vector<16x128xf32>
    %33 = tpu.matmul %32, %2, %cst_35 {dimension_numbers = #tpu.dot_dimension_numbers<[1], [0], [0], [1], [0, 0, 1, 1], [], []>} : vector<16x4xf32>, vector<4x128xf32>, vector<16x128xf32> -> vector<16x128xf32>
    %c1_36 = arith.constant 1 : index
    %c0_37 = arith.constant 0 : index
    %c0_38 = arith.constant 0 : index
    %34 = vector.load %arg1[%c1_36, %c0_37, %c0_38] : memref<2x16x16xf32, #tpu.memory_space<vmem>>, vector<1x16x16xf32>
    %35 = vector.shape_cast %34 : vector<1x16x16xf32> to vector<16x16xf32>
    %cst_39 = arith.constant dense<0.000000e+00> : vector<16x128xf32>
    %36 = tpu.matmul %35, %33, %cst_39 {dimension_numbers = #tpu.dot_dimension_numbers<[1], [0], [0], [1], [0, 0, 1, 1], [], []>} : vector<16x16xf32>, vector<16x128xf32>, vector<16x128xf32> -> vector<16x128xf32>
    %cst_40 = arith.constant dense<0.000000e+00> : vector<16x128xf32>
    %37 = tpu.matmul %32, %4, %cst_40 {dimension_numbers = #tpu.dot_dimension_numbers<[1], [0], [0], [1], [0, 0, 1, 1], [], []>} : vector<16x4xf32>, vector<4x128xf32>, vector<16x128xf32> -> vector<16x128xf32>
    %c0_41 = arith.constant 0 : index
    %c0_42 = arith.constant 0 : index
    %c0_43 = arith.constant 0 : index
    %38 = vector.load %arg3[%c0_41, %c0_42, %c0_43] : memref<2x16x16xf32, #tpu.memory_space<vmem>>, vector<1x16x16xf32>
    %39 = vector.shape_cast %38 : vector<1x16x16xf32> to vector<16x16xf32>
    %cst_44 = arith.constant dense<0.000000e+00> : vector<16x128xf32>
    %40 = tpu.matmul %39, %37, %cst_44 {dimension_numbers = #tpu.dot_dimension_numbers<[1], [0], [0], [1], [0, 0, 1, 1], [], []>} : vector<16x16xf32>, vector<16x128xf32>, vector<16x128xf32> -> vector<16x128xf32>
    %41 = arith.addf %36, %40 : vector<16x128xf32>
    %cst_45 = arith.constant dense<0.000000e+00> : vector<16x128xf32>
    %42 = tpu.matmul %32, %6, %cst_45 {dimension_numbers = #tpu.dot_dimension_numbers<[1], [0], [0], [1], [0, 0, 1, 1], [], []>} : vector<16x4xf32>, vector<4x128xf32>, vector<16x128xf32> -> vector<16x128xf32>
    %c1_46 = arith.constant 1 : index
    %c0_47 = arith.constant 0 : index
    %c0_48 = arith.constant 0 : index
    %43 = vector.load %arg3[%c1_46, %c0_47, %c0_48] : memref<2x16x16xf32, #tpu.memory_space<vmem>>, vector<1x16x16xf32>
    %44 = vector.shape_cast %43 : vector<1x16x16xf32> to vector<16x16xf32>
    %cst_49 = arith.constant dense<0.000000e+00> : vector<16x128xf32>
    %45 = tpu.matmul %44, %42, %cst_49 {dimension_numbers = #tpu.dot_dimension_numbers<[1], [0], [0], [1], [0, 0, 1, 1], [], []>} : vector<16x16xf32>, vector<16x128xf32>, vector<16x128xf32> -> vector<16x128xf32>
    %46 = arith.addf %41, %45 : vector<16x128xf32>
    %c1_50 = arith.constant 1 : index
    %c0_51 = arith.constant 0 : index
    %c0_52 = arith.constant 0 : index
    %47 = vector.load %arg2[%c1_50, %c0_51, %c0_52] : memref<2x16x16xf32, #tpu.memory_space<vmem>>, vector<1x16x16xf32>
    %48 = vector.shape_cast %47 : vector<1x16x16xf32> to vector<16x16xf32>
    %cst_53 = arith.constant dense<0.000000e+00> : vector<16x128xf32>
    %49 = tpu.matmul %48, %46, %cst_53 {dimension_numbers = #tpu.dot_dimension_numbers<[1], [0], [0], [1], [0, 0, 1, 1], [], []>} : vector<16x16xf32>, vector<16x128xf32>, vector<16x128xf32> -> vector<16x128xf32>
    %50 = vector.broadcast %0 : vector<1x128xf32> to vector<16x128xf32>
    %51 = arith.addf %49, %50 : vector<16x128xf32>
    %c1_54 = arith.constant 1 : index
    %c0_55 = arith.constant 0 : index
    %c0_56 = arith.constant 0 : index
    %52 = vector.load %arg7[%c1_54, %c0_55, %c0_56] : memref<2x16x128xf32, #tpu.memory_space<vmem>>, vector<1x16x128xf32>
    %53 = vector.shape_cast %52 : vector<1x16x128xf32> to vector<16x128xf32>
    %54 = vector.shape_cast %51 : vector<16x128xf32> to vector<1x16x128xf32>
    tpu.vector_store %arg7[%c1_54, %c0_55, %c0_56], %54 {strides = array<i32>} : memref<2x16x128xf32, #tpu.memory_space<vmem>>, vector<1x16x128xf32>,
    return
  }
  func.func @transform_0(%arg0: i32) -> (i32, i32, i32) {
    %c0_i32 = arith.constant 0 : i32
    %c0_i32_0 = arith.constant 0 : i32
    %c0_i32_1 = arith.constant 0 : i32
    return %arg0, %c0_i32, %c0_i32_0 : i32, i32, i32
  }
  func.func @transform_1(%arg0: i32) -> (i32, i32, i32) {
    %c0_i32 = arith.constant 0 : i32
    %c0_i32_0 = arith.constant 0 : i32
    %c0_i32_1 = arith.constant 0 : i32
    return %arg0, %c0_i32, %c0_i32_0 : i32, i32, i32
  }
  func.func @transform_2(%arg0: i32) -> (i32, i32, i32) {
    %c0_i32 = arith.constant 0 : i32
    %c0_i32_0 = arith.constant 0 : i32
    %c0_i32_1 = arith.constant 0 : i32
    %c0_i32_2 = arith.constant 0 : i32
    return %c0_i32, %c0_i32_0, %c0_i32_1 : i32, i32, i32
  }
  func.func @transform_3(%arg0: i32) -> (i32, i32, i32) {
    %c0_i32 = arith.constant 0 : i32
    %c0_i32_0 = arith.constant 0 : i32
    %c0_i32_1 = arith.constant 0 : i32
    return %arg0, %c0_i32, %c0_i32_0 : i32, i32, i32
  }
  func.func @transform_4(%arg0: i32) -> (i32, i32, i32) {
    %c0_i32 = arith.constant 0 : i32
    %c0_i32_0 = arith.constant 0 : i32
    %c0_i32_1 = arith.constant 0 : i32
    %c0_i32_2 = arith.constant 0 : i32
    return %c0_i32, %c0_i32_0, %c0_i32_1 : i32, i32, i32
  }
  func.func @transform_5(%arg0: i32) -> (i32, i32) {
    %c0_i32 = arith.constant 0 : i32
    %c0_i32_0 = arith.constant 0 : i32
    %c0_i32_1 = arith.constant 0 : i32
    return %c0_i32, %c0_i32_0 : i32, i32
  }
  func.func @transform_6(%arg0: i32) -> (i32, i32, i32) {
    %c0_i32 = arith.constant 0 : i32
    %c0_i32_0 = arith.constant 0 : i32
    %c0_i32_1 = arith.constant 0 : i32
    return %arg0, %c0_i32, %c0_i32_0 : i32, i32, i32
  }
}

</mosaic_0001>

<llo_original>
// kernel: tpu_custom_call.1
$region0: #{tpu_custom_call.1}
  #allocation0 [shape = 'u32[]', space=smem, size = 0x4, offset = 0x4, fixed_abs, tag = 'smem constant byte address 0x4 - core index']
  #allocation1 [shape = 'u32[144,128]{1,0:T(1,128)}', space=vmem, size = 0x12000, scoped, tag = 'internal scratch']
  %s0 = inlined_call_operand.vmem [shape: f32[4,16,16], index: 0, kind: input, shape index: {}]
  %s1 = inlined_call_operand.hbm [shape: f32[4,16,16], index: 1, kind: input, shape index: {}]
  %s2 = inlined_call_operand.hbm [shape: f32[2,16,16], index: 2, kind: input, shape index: {}]
  %s3 = inlined_call_operand.vmem [shape: f32[4,16,4], index: 3, kind: input, shape index: {}]
  %s4 = inlined_call_operand.vmem [shape: f32[3,4,128], index: 4, kind: input, shape index: {}]
  %s5 = inlined_call_operand.vmem [shape: f32[1,128], index: 5, kind: input, shape index: {}]
  %s6 = inlined_call_operand.hbm [shape: f32[4,16,128], index: 6, kind: output, shape index: {}]
  %s7 = sld [smem:[#allocation0]]
  $region65: #{tpu_custom_call.1} parent=0
    _
  %s9 = ssub.s32 1, %s7
  %s10 = scalar_select 0, %s9, %s7
  $region1: #{tpu_custom_call.1} parent=0
    #allocation2 [shape = 'u8[32768]{0}', space=vmem, size = 0x8000, scoped, tag = 'input window, operand 1']
    #allocation3 [shape = 's32[2]{0}', space=sflag, size = 0x8, scoped, tag = 'scoped memory for tpu_custom_call.1']
    #allocation4 [shape = 's32[2]{0}', space=sflag, size = 0x8, scoped, tag = 'scoped memory for tpu_custom_call.1']
    #allocation5 [shape = 'u8[16384]{0}', space=vmem, size = 0x4000, scoped, tag = 'input window, operand 2, single buffered']
    #allocation6 [shape = 's32[1]{0}', space=sflag, size = 0x4, scoped, tag = 'scoped memory for tpu_custom_call.1']
    #allocation7 [shape = 'u8[32768]{0}', space=vmem, size = 0x8000, scoped, tag = 'output window, operand 0']
    %11 = vsyncpa [#allocation3], 0
    %s12 = scalar_lea.sflag [#allocation3], 1
    %13 = vsyncpa %s12, 0
    %14 = vsyncpa [#allocation6], 0
    %15 = vsyncpa [#allocation4], 0
    %s16 = scalar_lea.sflag [#allocation4], 1
    %17 = vsyncpa %s16, 0
    loop: start=0, step=1, limit=4
    $region2: #{tpu_custom_call.1} parent=1 // loop_pre_header
      _
    $region3: #{tpu_custom_call.1} parent=1 // loop_header
      %s19 = sphi 0, %s23
      %p20 = scmp.ge.s32.totalorder %s19, 4
      %s29 = sphi 0, %s31
      %s32 = sphi 0, %s29
      %s33 = sphi 0, %s32
      %s49 = sphi 0, %s33
      %s55 = sphi 0, %s57
      %s58 = sphi 0, %s55
      %s59 = sphi 0, %s58
      %s75 = sphi 0, %s59
      %s79 = sphi 0, %s79
      %s81 = sphi 0, %s79
      %s82 = sphi 0, %s81
      %s96 = sphi 0, %s82
      %s102 = sphi 0, %s104
      %s105 = sphi 0, %s102
      %s106 = sphi 0, %s105
      %s122 = sphi 0, %s106
      %s126 = sphi 0, %s126
      %s128 = sphi 0, %s126
      %s129 = sphi 0, %s128
      %s143 = sphi 0, %s129
      %s147 = sphi 0, %s147
      %s149 = sphi 0, %s147
      %s150 = sphi 0, %s149
      %s164 = sphi 0, %s150
      %s170 = sphi 0, %s172
      %s173 = sphi 0, %s170
      %s174 = sphi 0, %s173
      %s190 = sphi 0, %s174
    $region4: #{tpu_custom_call.1} parent=1 // loop_header_branch
      %22 = sbr.rel (%p20) target = $region8
    $region5: #{tpu_custom_call.1} parent=1 // loop_body
      %s24 = ssub.s32 %s19, 1
      %s25 = ssub.s32 %s19, 2
      %s26 = sadd.s32 %s19, 1
      %s27 = ssub.s32 %s19, %s26
      %p28 = scmp.eq.s32.totalorder %s27, 0
      %s30 = sadd.s32 %s29, 1
      %s31 = scalar_select %p28, %s29, %s30
      %p34 = pneg %p28
      %p35 = scmp.eq.s32.totalorder %s19, 1
      %p36 = por %p34, %p35
      %p37 = scmp.ne.s32.totalorder %s29, %s32
      %p38 = scmp.eq.s32.totalorder %s19, 0
      %p39 = por %p37, %p38
      %p40 = scmp.ne.s32.totalorder %s29, %s32
      %p41 = scmp.eq.s32.totalorder %s24, 1
      %p42 = por %p40, %p41
      %p43 = scmp.ne.s32.totalorder %s32, %s33
      %p44 = scmp.eq.s32.totalorder %s24, 0
      %p45 = por %p43, %p44
      %p46 = scmp.ne.s32.totalorder %s32, %s33
      %p47 = scmp.eq.s32.totalorder %s25, 1
      %p48 = por %p46, %p47
      %p50 = scmp.ne.s32.totalorder %s33, %s49
      %p51 = scmp.eq.s32.totalorder %s25, 0
      %p52 = por %p50, %p51
      %s53 = ssub.s32 %s19, %s26
      %p54 = scmp.eq.s32.totalorder %s53, 0
      %s56 = sadd.s32 %s55, 1
      %s57 = scalar_select %p54, %s55, %s56
      %p60 = pneg %p54
      %p61 = scmp.eq.s32.totalorder %s19, 1
      %p62 = por %p60, %p61
      %p63 = scmp.ne.s32.totalorder %s55, %s58
      %p64 = scmp.eq.s32.totalorder %s19, 0
      %p65 = por %p63, %p64
      %p66 = scmp.ne.s32.totalorder %s55, %s58
      %p67 = scmp.eq.s32.totalorder %s24, 1
      %p68 = por %p66, %p67
      %p69 = scmp.ne.s32.totalorder %s58, %s59
      %p70 = scmp.eq.s32.totalorder %s24, 0
      %p71 = por %p69, %p70
      %p72 = scmp.ne.s32.totalorder %s58, %s59
      %p73 = scmp.eq.s32.totalorder %s25, 1
      %p74 = por %p72, %p73
      %p76 = scmp.ne.s32.totalorder %s59, %s75
      %p77 = scmp.eq.s32.totalorder %s25, 0
      %p78 = por %p76, %p77
      %s80 = sadd.s32 %s79, 1
      %p83 = scmp.eq.s32.totalorder %s19, 1
      %p84 = scmp.ne.s32.totalorder %s79, %s81
      %p85 = scmp.eq.s32.totalorder %s19, 0
      %p86 = por %p84, %p85
      %p87 = scmp.ne.s32.totalorder %s79, %s81
      %p88 = scmp.eq.s32.totalorder %s24, 1
      %p89 = por %p87, %p88
      %p90 = scmp.ne.s32.totalorder %s81, %s82
      %p91 = scmp.eq.s32.totalorder %s24, 0
      %p92 = por %p90, %p91
      %p93 = scmp.ne.s32.totalorder %s81, %s82
      %p94 = scmp.eq.s32.totalorder %s25, 1
      %p95 = por %p93, %p94
      %p97 = scmp.ne.s32.totalorder %s82, %s96
      %p98 = scmp.eq.s32.totalorder %s25, 0
      %p99 = por %p97, %p98
      %s100 = ssub.s32 %s19, %s26
      %p101 = scmp.eq.s32.totalorder %s100, 0
      %s103 = sadd.s32 %s102, 1
      %s104 = scalar_select %p101, %s102, %s103
      %p107 = pneg %p101
      %p108 = scmp.eq.s32.totalorder %s19, 1
      %p109 = por %p107, %p108
      %p110 = scmp.ne.s32.totalorder %s102, %s105
      %p111 = scmp.eq.s32.totalorder %s19, 0
      %p112 = por %p110, %p111
      %p113 = scmp.ne.s32.totalorder %s102, %s105
      %p114 = scmp.eq.s32.totalorder %s24, 1
      %p115 = por %p113, %p114
      %p116 = scmp.ne.s32.totalorder %s105, %s106
      %p117 = scmp.eq.s32.totalorder %s24, 0
      %p118 = por %p116, %p117
      %p119 = scmp.ne.s32.totalorder %s105, %s106
      %p120 = scmp.eq.s32.totalorder %s25, 1
      %p121 = por %p119, %p120
      %p123 = scmp.ne.s32.totalorder %s106, %s122
      %p124 = scmp.eq.s32.totalorder %s25, 0
      %p125 = por %p123, %p124
      %s127 = sadd.s32 %s126, 1
      %p130 = scmp.eq.s32.totalorder %s19, 1
      %p131 = scmp.ne.s32.totalorder %s126, %s128
      %p132 = scmp.eq.s32.totalorder %s19, 0
      %p133 = por %p131, %p132
      %p134 = scmp.ne.s32.totalorder %s126, %s128
      %p135 = scmp.eq.s32.totalorder %s24, 1
      %p136 = por %p134, %p135
      %p137 = scmp.ne.s32.totalorder %s128, %s129
      %p138 = scmp.eq.s32.totalorder %s24, 0
      %p139 = por %p137, %p138
      %p140 = scmp.ne.s32.totalorder %s128, %s129
      %p141 = scmp.eq.s32.totalorder %s25, 1
      %p142 = por %p140, %p141
      %p144 = scmp.ne.s32.totalorder %s129, %s143
      %p145 = scmp.eq.s32.totalorder %s25, 0
      %p146 = por %p144, %p145
      %s148 = sadd.s32 %s147, 1
      %p151 = scmp.eq.s32.totalorder %s19, 1
      %p152 = scmp.ne.s32.totalorder %s147, %s149
      %p153 = scmp.eq.s32.totalorder %s19, 0
      %p154 = por %p152, %p153
      %p155 = scmp.ne.s32.totalorder %s147, %s149
      %p156 = scmp.eq.s32.totalorder %s24, 1
      %p157 = por %p155, %p156
      %p158 = scmp.ne.s32.totalorder %s149, %s150
      %p159 = scmp.eq.s32.totalorder %s24, 0
      %p160 = por %p158, %p159
      %p161 = scmp.ne.s32.totalorder %s149, %s150
      %p162 = scmp.eq.s32.totalorder %s25, 1
      %p163 = por %p161, %p162
      %p165 = scmp.ne.s32.totalorder %s150, %s164
      %p166 = scmp.eq.s32.totalorder %s25, 0
      %p167 = por %p165, %p166
      %s168 = ssub.s32 %s19, %s26
      %p169 = scmp.eq.s32.totalorder %s168, 0
      %s171 = sadd.s32 %s170, 1
      %s172 = scalar_select %p169, %s170, %s171
      %p175 = pneg %p169
      %p176 = scmp.eq.s32.totalorder %s19, 1
      %p177 = por %p175, %p176
      %p178 = scmp.ne.s32.totalorder %s170, %s173
      %p179 = scmp.eq.s32.totalorder %s19, 0
      %p180 = por %p178, %p179
      %p181 = scmp.ne.s32.totalorder %s170, %s173
      %p182 = scmp.eq.s32.totalorder %s24, 1
      %p183 = por %p181, %p182
      %p184 = scmp.ne.s32.totalorder %s173, %s174
      %p185 = scmp.eq.s32.totalorder %s24, 0
      %p186 = por %p184, %p185
      %p187 = scmp.ne.s32.totalorder %s173, %s174
      %p188 = scmp.eq.s32.totalorder %s25, 1
      %p189 = por %p187, %p188
      %p191 = scmp.ne.s32.totalorder %s174, %s190
      %p192 = scmp.eq.s32.totalorder %s25, 0
      %p193 = por %p191, %p192
      %p194 = scmp.le.s32.totalorder 1, %s19
      %p195 = scmp.lt.s32.totalorder %s19, 3
      %p196 = pnand %p194, %p195
      %p197 = pneg %p196
      // Predicated region
      $region9: #{tpu_custom_call.1} parent=5 // pred_check
        _
      $region10: #{tpu_custom_call.1} parent=5 // pred_check_branch
        %199 = sbr.rel (%p196) target = $region12
      $region11: #{tpu_custom_call.1} parent=5 // pred_region
        %s200 = ssub.s32 %s19, 1
        // Predicated region
        $region13: #{tpu_custom_call.1} parent=11 // pred_check
          %p201 = pneg %p92
        $region14: #{tpu_custom_call.1} parent=11 // pred_check_branch
          %203 = sbr.rel (%p201) target = $region16
        $region15: #{tpu_custom_call.1} parent=11 // pred_region
          %s205 = ssub.s32 512, 512
          %206 = vsyncadd [#allocation6], %s205
          %s207 = sshll.u32 [#allocation5], 4
          %s208 = int_to_ptr.vmem [resolvable:$true] %s207
          %213 = dma.hbm_to_vmem [thread:$0]  %s2, 512, %s208, [#allocation6], 128, 128, 8
        $region16: #{tpu_custom_call.1} parent=11 // pred_fallthru
          _
        // Predicated region
        $region17: #{tpu_custom_call.1} parent=11 // pred_check
          %p214 = pneg %p139
        $region18: #{tpu_custom_call.1} parent=11 // pred_check_branch
          %216 = sbr.rel (%p214) target = $region20
        $region19: #{tpu_custom_call.1} parent=11 // pred_region
          _
        $region20: #{tpu_custom_call.1} parent=11 // pred_fallthru
          _
        // Predicated region
        $region21: #{tpu_custom_call.1} parent=11 // pred_check
          %p217 = pneg %p160
        $region22: #{tpu_custom_call.1} parent=11 // pred_check_branch
          %219 = sbr.rel (%p217) target = $region24
        $region23: #{tpu_custom_call.1} parent=11 // pred_region
          _
        $region24: #{tpu_custom_call.1} parent=11 // pred_fallthru
          _
      $region12: #{tpu_custom_call.1} parent=5 // pred_fallthru
        _
      %p220 = scmp.lt.s32.totalorder %s19, 2
      // Predicated region
      $region25: #{tpu_custom_call.1} parent=5 // pred_check
        %p221 = pneg %p220
      $region26: #{tpu_custom_call.1} parent=5 // pred_check_branch
        %223 = sbr.rel (%p221) target = $region28
      $region27: #{tpu_custom_call.1} parent=5 // pred_region
        // Predicated region
        $region29: #{tpu_custom_call.1} parent=27 // pred_check
          %p224 = pneg %p39
        $region30: #{tpu_custom_call.1} parent=27 // pred_check_branch
          %226 = sbr.rel (%p224) target = $region32
        $region31: #{tpu_custom_call.1} parent=27 // pred_region
          %s227 = smul.u32 2, %s19
          %p228 = scmp.lt.s32.totalorder %s227, 3
          %s229 = scalar_select %p228, %s227, 3
          %s230 = smul.addr %s229, 2
          %s231 = smul.addr %s230, 8
          %s232 = scalar_lea.vmem %s0, %s231
          %s233 = smul.u32 2, %s19
        $region32: #{tpu_custom_call.1} parent=27 // pred_fallthru
          _
        // Predicated region
        $region33: #{tpu_custom_call.1} parent=27 // pred_check
          %p234 = pneg %p65
        $region34: #{tpu_custom_call.1} parent=27 // pred_check_branch
          %236 = sbr.rel (%p234) target = $region36
        $region35: #{tpu_custom_call.1} parent=27 // pred_region
          %s237 = sand.u32 %s55, 1
          %s238 = scalar_lea.sflag [#allocation3], %s237
          %s239 = sand.u32 %s55, 1
          %s240 = smul.addr %s239, 32
          %s241 = scalar_lea.vmem [#allocation2], %s240
          %s242 = smul.u32 2, %s19
          %s244 = ssub.s32 512, 512
          %245 = vsyncadd %s238, %s244
          %s246 = smul.addr %s242, 2
          %s247 = smul.addr %s246, 128
          %s248 = scalar_lea.hbm %s1, %s247
          %s249 = sshll.u32 %s241, 4
          %s250 = int_to_ptr.vmem [resolvable:$true] %s249
          %255 = dma.hbm_to_vmem [thread:$0]  %s248, 512, %s250, %s238, 128, 128, 8
        $region36: #{tpu_custom_call.1} parent=27 // pred_fallthru
          _
        // Predicated region
        $region37: #{tpu_custom_call.1} parent=27 // pred_check
          %p256 = pneg %p112
        $region38: #{tpu_custom_call.1} parent=27 // pred_check_branch
          %258 = sbr.rel (%p256) target = $region40
        $region39: #{tpu_custom_call.1} parent=27 // pred_region
          %s259 = smul.u32 2, %s19
          %p260 = scmp.lt.s32.totalorder %s259, 3
          %s261 = scalar_select %p260, %s259, 3
          %s262 = smul.addr %s261, 2
          %s263 = smul.addr %s262, 8
          %s264 = scalar_lea.vmem %s3, %s263
          %s265 = smul.u32 2, %s19
        $region40: #{tpu_custom_call.1} parent=27 // pred_fallthru
          _
      $region28: #{tpu_custom_call.1} parent=5 // pred_fallthru
        _
      %p266 = scmp.le.s32.totalorder 1, %s19
      %p267 = scmp.lt.s32.totalorder %s19, 3
      %p268 = pnand %p266, %p267
      %p269 = pneg %p268
      // Predicated region
      $region41: #{tpu_custom_call.1} parent=5 // pred_check
        _
      $region42: #{tpu_custom_call.1} parent=5 // pred_check_branch
        %271 = sbr.rel (%p268) target = $region44
      $region43: #{tpu_custom_call.1} parent=5 // pred_region
        %s272 = ssub.s32 %s19, 1
        %s273 = sand.u32 %s58, 1
        %s274 = scalar_lea.sflag [#allocation3], %s273
        %s275 = sand.u32 %s58, 1
        %s276 = smul.addr %s275, 32
        %s277 = scalar_lea.vmem [#allocation2], %s276
        // Predicated region
        $region45: #{tpu_custom_call.1} parent=43 // pred_check
          %p278 = pneg %p71
        $region46: #{tpu_custom_call.1} parent=43 // pred_check_branch
          %280 = sbr.rel (%p278) target = $region48
        $region47: #{tpu_custom_call.1} parent=43 // pred_region
          %281 = dma.done %s274, 512
        $region48: #{tpu_custom_call.1} parent=43 // pred_fallthru
          _
        // Predicated region
        $region49: #{tpu_custom_call.1} parent=43 // pred_check
          %p282 = pneg %p92
        $region50: #{tpu_custom_call.1} parent=43 // pred_check_branch
          %284 = sbr.rel (%p282) target = $region52
        $region51: #{tpu_custom_call.1} parent=43 // pred_region
          %285 = dma.done [#allocation6], 512
        $region52: #{tpu_custom_call.1} parent=43 // pred_fallthru
          _
        %s286 = smul.u32 2, %s24
        %p287 = scmp.lt.s32.totalorder %s286, 3
        %s288 = scalar_select %p287, %s286, 3
        %s289 = smul.addr %s288, 2
        %s290 = smul.addr %s289, 8
        %s291 = scalar_lea.vmem %s0, %s290
        %p292 = pneg %p45
        %p293 = pneg %p42
        %s294 = sand.u32 %s58, 1
        %s295 = scalar_lea.sflag [#allocation3], %s294
        %s296 = sand.u32 %s58, 1
        %s297 = smul.addr %s296, 32
        %s298 = scalar_lea.vmem [#allocation2], %s297
        %p299 = pneg %p71
        %p300 = pneg %p68
        %p301 = pneg %p92
        %p302 = pneg %p89
        %s303 = smul.u32 2, %s24
        %p304 = scmp.lt.s32.totalorder %s303, 3
        %s305 = scalar_select %p304, %s303, 3
        %s306 = smul.addr %s305, 2
        %s307 = smul.addr %s306, 8
        %s308 = scalar_lea.vmem %s3, %s307
        %p309 = pneg %p118
        %p310 = pneg %p115
        %p311 = pneg %p139
        %p312 = pneg %p136
        %p313 = pneg %p160
        %p314 = pneg %p157
        %p315 = pneg %p186
        %p316 = pneg %p183
        %s317 = sand.u32 %s173, 1
        %s318 = scalar_lea.sflag [#allocation4], %s317
        %s319 = sand.u32 %s173, 1
        %s320 = smul.addr %s319, 32
        %s321 = scalar_lea.vmem [#allocation7], %s320
        %s322 = smul.u32 2, %s24
        %p323 = scmp.lt.s32.totalorder %s322, 3
        %s324 = scalar_select %p323, %s322, 3
        %s325 = smul.addr %s324, 2
        %s326 = smul.addr %s325, 8
        %s327 = scalar_lea.vmem %s0, %s326
        %s328 = smul.u32 2, %s24
        %s329 = smul.u32 2, %s24
        %s330 = smul.u32 2, %s24
        %p331 = scmp.lt.s32.totalorder %s330, 3
        %s332 = scalar_select %p331, %s330, 3
        %s333 = smul.addr %s332, 2
        %s334 = smul.addr %s333, 8
        %s335 = scalar_lea.vmem %s3, %s334
        %s336 = smul.u32 2, %s24
        %s337 = smul.u32 2, %s24
        %v338 = vld [vmem:[%s5] sm:$0x1]
        %v339 = vld [vmem:[%s4] sm:$0xf]
        %s340 = scalar_lea.vmem %s4, 4
        %v341 = vld [vmem:[%s340] sm:$0xf]
        %s342 = scalar_lea.vmem %s4, 8
        %v343 = vld [vmem:[%s342] sm:$0xf]
        %v344 = vld [vmem:[%s335] sm:$0xff]
        %v345 = vld [vmem:[%s335 + $0x8] sm:$0xff]
        %vm346 = vcmask 31744
        %v348 = vsel %vm346, %v344, 0
        %v351 = vsel %vm346, %v345, 0
        %vm353 = vcmask 1043456
        %v355 = vsel %vm353, %v339, 0
        %357 = vmatprep.subr.mxu0 0.0
        %358 = vmatpush1.msra.mxu0 %v355
        %359 = vmatprep.subr.mxu0 0.0
        %360 = vmatpush1.msra.mxu0 0.0
        %361 = vmatprep.subr.mxu0 0.0
        %362 = vmatpush1.msra.mxu0 0.0
        %363 = vmatprep.subr.mxu0 0.0
        %364 = vmatpush1.msra.mxu0 0.0
        %365 = vmatprep.subr.mxu0 0.0
        %366 = vmatpush1.msra.mxu0 0.0
        %367 = vmatprep.subr.mxu0 0.0
        %368 = vmatpush1.msra.mxu0 0.0
        %369 = vmatprep.subr.mxu0 0.0
        %370 = vmatpush1.msra.mxu0 0.0
        %371 = vmatprep.subr.mxu0 0.0
        %372 = vmatpush1.msra.mxu0 0.0
        %373 = vmatprep.subr.mxu0 0.0
        %374 = vmatpush1.msra.mxu0 0.0
        %375 = vmatprep.subr.mxu0 0.0
        %376 = vmatpush1.msra.mxu0 0.0
        %377 = vmatprep.subr.mxu0 0.0
        %378 = vmatpush1.msra.mxu0 0.0
        %379 = vmatprep.subr.mxu0 0.0
        %380 = vmatpush1.msra.mxu0 0.0
        %381 = vmatprep.subr.mxu0 0.0
        %382 = vmatpush1.msra.mxu0 0.0
        %383 = vmatprep.subr.mxu0 0.0
        %384 = vmatpush1.msra.mxu0 0.0
        %385 = vmatprep.subr.mxu0 0.0
        %386 = vmatpush1.msra.mxu0 0.0
        %387 = vmatprep.subr.mxu0 0.0
        %388 = vmatpush1.msra.mxu0 0.0
        %389 = vmatprep.subr.mxu0 0.0
        %390 = vmatpush1.msra.mxu0 0.0
        %391 = vmatprep.subr.mxu0 0.0
        %392 = vmatpush1.msra.mxu0 0.0
        %393 = vmatprep.subr.mxu0 0.0
        %394 = vmatpush1.msra.mxu0 0.0
        %395 = vmatprep.subr.mxu0 0.0
        %396 = vmatpush1.msra.mxu0 0.0
        %397 = vmatprep.subr.mxu0 0.0
        %398 = vmatpush1.msra.mxu0 0.0
        %399 = vmatprep.subr.mxu0 0.0
        %400 = vmatpush1.msra.mxu0 0.0
        %401 = vmatprep.subr.mxu0 0.0
        %402 = vmatpush1.msra.mxu0 0.0
        %403 = vmatprep.subr.mxu0 0.0
        %404 = vmatpush1.msra.mxu0 0.0
        %405 = vmatprep.subr.mxu0 0.0
        %406 = vmatpush1.msra.mxu0 0.0
        %407 = vmatprep.subr.mxu0 0.0
        %408 = vmatpush1.msra.mxu0 0.0
        %409 = vmatprep.subr.mxu0 0.0
        %410 = vmatpush1.msra.mxu0 0.0
        %411 = vmatprep.subr.mxu0 0.0
        %412 = vmatpush1.msra.mxu0 0.0
        %413 = vmatprep.subr.mxu0 0.0
        %414 = vmatpush1.msra.mxu0 0.0
        %415 = vmatprep.subr.mxu0 0.0
        %416 = vmatpush1.msra.mxu0 0.0
        %417 = vmatprep.subr.mxu0 0.0
        %418 = vmatpush1.msra.mxu0 0.0
        %419 = vmatprep.subr.mxu0 0.0
        %420 = vmatpush1.msra.mxu0 0.0
        %421 = vmatprep.mubr.f32.mxu0 0.0
        %422 = vmatmul.mubr.f32.gmra.mrb[0].mxu0 %v348
        %v423 = vpop.f32.mrb[0].mxu0
        %v424 = vadd.f32 0.0, %v423
        %v425 = vpop.f32.mrb[0].mxu0
        %426 = vmatprep.mubr.f32.mxu0 0.0
        %427 = vmatmul.mubr.f32.gmra.mrb[0].mxu0 %v351
        %v428 = vpop.f32.mrb[0].mxu0
        %v429 = vadd.f32 0.0, %v428
        %v430 = vpop.f32.mrb[0].mxu0
        %431 = vdwg.mxu0
        %v432 = vld [vmem:[%s327] sm:$0xff]
        %v433 = vld [vmem:[%s327 + $0x8] sm:$0xff]
        %v435 = vsel %vm353, %v341, 0
        %437 = vmatprep.subr.mxu0 0.0
        %438 = vmatpush1.msra.mxu0 %v435
        %439 = vmatprep.subr.mxu0 0.0
        %440 = vmatpush1.msra.mxu0 0.0
        %441 = vmatprep.subr.mxu0 0.0
        %442 = vmatpush1.msra.mxu0 0.0
        %443 = vmatprep.subr.mxu0 0.0
        %444 = vmatpush1.msra.mxu0 0.0
        %445 = vmatprep.subr.mxu0 0.0
        %446 = vmatpush1.msra.mxu0 0.0
        %447 = vmatprep.subr.mxu0 0.0
        %448 = vmatpush1.msra.mxu0 0.0
        %449 = vmatprep.subr.mxu0 0.0
        %450 = vmatpush1.msra.mxu0 0.0
        %451 = vmatprep.subr.mxu0 0.0
        %452 = vmatpush1.msra.mxu0 0.0
        %453 = vmatprep.subr.mxu0 0.0
        %454 = vmatpush1.msra.mxu0 0.0
        %455 = vmatprep.subr.mxu0 0.0
        %456 = vmatpush1.msra.mxu0 0.0
        %457 = vmatprep.subr.mxu0 0.0
        %458 = vmatpush1.msra.mxu0 0.0
        %459 = vmatprep.subr.mxu0 0.0
        %460 = vmatpush1.msra.mxu0 0.0
        %461 = vmatprep.subr.mxu0 0.0
        %462 = vmatpush1.msra.mxu0 0.0
        %463 = vmatprep.subr.mxu0 0.0
        %464 = vmatpush1.msra.mxu0 0.0
        %465 = vmatprep.subr.mxu0 0.0
        %466 = vmatpush1.msra.mxu0 0.0
        %467 = vmatprep.subr.mxu0 0.0
        %468 = vmatpush1.msra.mxu0 0.0
        %469 = vmatprep.subr.mxu0 0.0
        %470 = vmatpush1.msra.mxu0 0.0
        %471 = vmatprep.subr.mxu0 0.0
        %472 = vmatpush1.msra.mxu0 0.0
        %473 = vmatprep.subr.mxu0 0.0
        %474 = vmatpush1.msra.mxu0 0.0
        %475 = vmatprep.subr.mxu0 0.0
        %476 = vmatpush1.msra.mxu0 0.0
        %477 = vmatprep.subr.mxu0 0.0
        %478 = vmatpush1.msra.mxu0 0.0
        %479 = vmatprep.subr.mxu0 0.0
        %480 = vmatpush1.msra.mxu0 0.0
        %481 = vmatprep.subr.mxu0 0.0
        %482 = vmatpush1.msra.mxu0 0.0
        %483 = vmatprep.subr.mxu0 0.0
        %484 = vmatpush1.msra.mxu0 0.0
        %485 = vmatprep.subr.mxu0 0.0
        %486 = vmatpush1.msra.mxu0 0.0
        %487 = vmatprep.subr.mxu0 0.0
        %488 = vmatpush1.msra.mxu0 0.0
        %489 = vmatprep.subr.mxu0 0.0
        %490 = vmatpush1.msra.mxu0 0.0
        %491 = vmatprep.subr.mxu0 0.0
        %492 = vmatpush1.msra.mxu0 0.0
        %493 = vmatprep.subr.mxu0 0.0
        %494 = vmatpush1.msra.mxu0 0.0
        %495 = vmatprep.subr.mxu0 0.0
        %496 = vmatpush1.msra.mxu0 0.0
        %497 = vmatprep.subr.mxu0 0.0
        %498 = vmatpush1.msra.mxu0 0.0
        %499 = vmatprep.subr.mxu0 0.0
        %500 = vmatpush1.msra.mxu0 0.0
        %501 = vmatprep.mubr.f32.mxu0 0.0
        %502 = vmatmul.mubr.f32.gmra.mrb[0].mxu0 %v348
        %v503 = vpop.f32.mrb[0].mxu0
        %v504 = vadd.f32 0.0, %v503
        %v505 = vpop.f32.mrb[0].mxu0
        %506 = vmatprep.mubr.f32.mxu0 0.0
        %507 = vmatmul.mubr.f32.gmra.mrb[0].mxu0 %v351
        %v508 = vpop.f32.mrb[0].mxu0
        %v509 = vadd.f32 0.0, %v508
        %v510 = vpop.f32.mrb[0].mxu0
        %511 = vdwg.mxu0
        %v512 = vld [vmem:[#allocation5] sm:$0xff]
        %v513 = vld [vmem:[#allocation5 + $0x8] sm:$0xff]
        %vm514 = vcmask 130048
        %v516 = vsel %vm514, %v512, 0
        %v519 = vsel %vm514, %v513, 0
        %521 = vmatprep.subr.mxu0 0.0
        %522 = vmatpush1.msra.mxu0 %v504
        %523 = vmatprep.subr.mxu0 0.0
        %524 = vmatpush1.msra.mxu0 %v509
        %525 = vmatprep.subr.mxu0 0.0
        %526 = vmatpush1.msra.mxu0 0.0
        %527 = vmatprep.subr.mxu0 0.0
        %528 = vmatpush1.msra.mxu0 0.0
        %529 = vmatprep.subr.mxu0 0.0
        %530 = vmatpush1.msra.mxu0 0.0
        %531 = vmatprep.subr.mxu0 0.0
        %532 = vmatpush1.msra.mxu0 0.0
        %533 = vmatprep.subr.mxu0 0.0
        %534 = vmatpush1.msra.mxu0 0.0
        %535 = vmatprep.subr.mxu0 0.0
        %536 = vmatpush1.msra.mxu0 0.0
        %537 = vmatprep.subr.mxu0 0.0
        %538 = vmatpush1.msra.mxu0 0.0
        %539 = vmatprep.subr.mxu0 0.0
        %540 = vmatpush1.msra.mxu0 0.0
        %541 = vmatprep.subr.mxu0 0.0
        %542 = vmatpush1.msra.mxu0 0.0
        %543 = vmatprep.subr.mxu0 0.0
        %544 = vmatpush1.msra.mxu0 0.0
        %545 = vmatprep.subr.mxu0 0.0
        %546 = vmatpush1.msra.mxu0 0.0
        %547 = vmatprep.subr.mxu0 0.0
        %548 = vmatpush1.msra.mxu0 0.0
        %549 = vmatprep.subr.mxu0 0.0
        %550 = vmatpush1.msra.mxu0 0.0
        %551 = vmatprep.subr.mxu0 0.0
        %552 = vmatpush1.msra.mxu0 0.0
        %553 = vmatprep.subr.mxu0 0.0
        %554 = vmatpush1.msra.mxu0 0.0
        %555 = vmatprep.subr.mxu0 0.0
        %556 = vmatpush1.msra.mxu0 0.0
        %557 = vmatprep.subr.mxu0 0.0
        %558 = vmatpush1.msra.mxu0 0.0
        %559 = vmatprep.subr.mxu0 0.0
        %560 = vmatpush1.msra.mxu0 0.0
        %561 = vmatprep.subr.mxu0 0.0
        %562 = vmatpush1.msra.mxu0 0.0
        %563 = vmatprep.subr.mxu0 0.0
        %564 = vmatpush1.msra.mxu0 0.0
        %565 = vmatprep.subr.mxu0 0.0
        %566 = vmatpush1.msra.mxu0 0.0
        %567 = vmatprep.subr.mxu0 0.0
        %568 = vmatpush1.msra.mxu0 0.0
        %569 = vmatprep.subr.mxu0 0.0
        %570 = vmatpush1.msra.mxu0 0.0
        %571 = vmatprep.subr.mxu0 0.0
        %572 = vmatpush1.msra.mxu0 0.0
        %573 = vmatprep.subr.mxu0 0.0
        %574 = vmatpush1.msra.mxu0 0.0
        %575 = vmatprep.subr.mxu0 0.0
        %576 = vmatpush1.msra.mxu0 0.0
        %577 = vmatprep.subr.mxu0 0.0
        %578 = vmatpush1.msra.mxu0 0.0
        %579 = vmatprep.subr.mxu0 0.0
        %580 = vmatpush1.msra.mxu0 0.0
        %581 = vmatprep.subr.mxu0 0.0
        %582 = vmatpush1.msra.mxu0 0.0
        %583 = vmatprep.subr.mxu0 0.0
        %584 = vmatpush1.msra.mxu0 0.0
        %585 = vmatprep.mubr.f32.mxu0 0.0
        %586 = vmatmul.mubr.f32.gmra.mrb[0].mxu0 %v516
        %v587 = vpop.f32.mrb[0].mxu0
        %v588 = vadd.f32 0.0, %v587
        %v589 = vpop.f32.mrb[0].mxu0
        %590 = vmatprep.mubr.f32.mxu0 0.0
        %591 = vmatmul.mubr.f32.gmra.mrb[0].mxu0 %v519
        %v592 = vpop.f32.mrb[0].mxu0
        %v593 = vadd.f32 0.0, %v592
        %v594 = vpop.f32.mrb[0].mxu0
        %595 = vdwg.mxu0
        %v597 = vsel %vm514, %v432, 0
        %v600 = vsel %vm514, %v433, 0
        %602 = vmatprep.subr.mxu0 0.0
        %603 = vmatpush1.msra.mxu0 %v424
        %604 = vmatprep.subr.mxu0 0.0
        %605 = vmatpush1.msra.mxu0 %v429
        %606 = vmatprep.subr.mxu0 0.0
        %607 = vmatpush1.msra.mxu0 0.0
        %608 = vmatprep.subr.mxu0 0.0
        %609 = vmatpush1.msra.mxu0 0.0
        %610 = vmatprep.subr.mxu0 0.0
        %611 = vmatpush1.msra.mxu0 0.0
        %612 = vmatprep.subr.mxu0 0.0
        %613 = vmatpush1.msra.mxu0 0.0
        %614 = vmatprep.subr.mxu0 0.0
        %615 = vmatpush1.msra.mxu0 0.0
        %616 = vmatprep.subr.mxu0 0.0
        %617 = vmatpush1.msra.mxu0 0.0
        %618 = vmatprep.subr.mxu0 0.0
        %619 = vmatpush1.msra.mxu0 0.0
        %620 = vmatprep.subr.mxu0 0.0
        %621 = vmatpush1.msra.mxu0 0.0
        %622 = vmatprep.subr.mxu0 0.0
        %623 = vmatpush1.msra.mxu0 0.0
        %624 = vmatprep.subr.mxu0 0.0
        %625 = vmatpush1.msra.mxu0 0.0
        %626 = vmatprep.subr.mxu0 0.0
        %627 = vmatpush1.msra.mxu0 0.0
        %628 = vmatprep.subr.mxu0 0.0
        %629 = vmatpush1.msra.mxu0 0.0
        %630 = vmatprep.subr.mxu0 0.0
        %631 = vmatpush1.msra.mxu0 0.0
        %632 = vmatprep.subr.mxu0 0.0
        %633 = vmatpush1.msra.mxu0 0.0
        %634 = vmatprep.subr.mxu0 0.0
        %635 = vmatpush1.msra.mxu0 0.0
        %636 = vmatprep.subr.mxu0 0.0
        %637 = vmatpush1.msra.mxu0 0.0
        %638 = vmatprep.subr.mxu0 0.0
        %639 = vmatpush1.msra.mxu0 0.0
        %640 = vmatprep.subr.mxu0 0.0
        %641 = vmatpush1.msra.mxu0 0.0
        %642 = vmatprep.subr.mxu0 0.0
        %643 = vmatpush1.msra.mxu0 0.0
        %644 = vmatprep.subr.mxu0 0.0
        %645 = vmatpush1.msra.mxu0 0.0
        %646 = vmatprep.subr.mxu0 0.0
        %647 = vmatpush1.msra.mxu0 0.0
        %648 = vmatprep.subr.mxu0 0.0
        %649 = vmatpush1.msra.mxu0 0.0
        %650 = vmatprep.subr.mxu0 0.0
        %651 = vmatpush1.msra.mxu0 0.0
        %652 = vmatprep.subr.mxu0 0.0
        %653 = vmatpush1.msra.mxu0 0.0
        %654 = vmatprep.subr.mxu0 0.0
        %655 = vmatpush1.msra.mxu0 0.0
        %656 = vmatprep.subr.mxu0 0.0
        %657 = vmatpush1.msra.mxu0 0.0
        %658 = vmatprep.subr.mxu0 0.0
        %659 = vmatpush1.msra.mxu0 0.0
        %660 = vmatprep.subr.mxu0 0.0
        %661 = vmatpush1.msra.mxu0 0.0
        %662 = vmatprep.subr.mxu0 0.0
        %663 = vmatpush1.msra.mxu0 0.0
        %664 = vmatprep.subr.mxu0 0.0
        %665 = vmatpush1.msra.mxu0 0.0
        %666 = vmatprep.mubr.f32.mxu0 0.0
        %667 = vmatmul.mubr.f32.gmra.mrb[0].mxu0 %v597
        %v668 = vpop.f32.mrb[0].mxu0
        %v669 = vadd.f32 %v588, %v668
        %v670 = vpop.f32.mrb[0].mxu0
        %671 = vmatprep.mubr.f32.mxu0 0.0
        %672 = vmatmul.mubr.f32.gmra.mrb[0].mxu0 %v600
        %v673 = vpop.f32.mrb[0].mxu0
        %v674 = vadd.f32 %v593, %v673
        %v675 = vpop.f32.mrb[0].mxu0
        %676 = vdwg.mxu0
        %v678 = vsel %vm353, %v343, 0
        %680 = vmatprep.subr.mxu0 0.0
        %681 = vmatpush1.msra.mxu0 %v678
        %682 = vmatprep.subr.mxu0 0.0
        %683 = vmatpush1.msra.mxu0 0.0
        %684 = vmatprep.subr.mxu0 0.0
        %685 = vmatpush1.msra.mxu0 0.0
        %686 = vmatprep.subr.mxu0 0.0
        %687 = vmatpush1.msra.mxu0 0.0
        %688 = vmatprep.subr.mxu0 0.0
        %689 = vmatpush1.msra.mxu0 0.0
        %690 = vmatprep.subr.mxu0 0.0
        %691 = vmatpush1.msra.mxu0 0.0
        %692 = vmatprep.subr.mxu0 0.0
        %693 = vmatpush1.msra.mxu0 0.0
        %694 = vmatprep.subr.mxu0 0.0
        %695 = vmatpush1.msra.mxu0 0.0
        %696 = vmatprep.subr.mxu0 0.0
        %697 = vmatpush1.msra.mxu0 0.0
        %698 = vmatprep.subr.mxu0 0.0
        %699 = vmatpush1.msra.mxu0 0.0
        %700 = vmatprep.subr.mxu0 0.0
        %701 = vmatpush1.msra.mxu0 0.0
        %702 = vmatprep.subr.mxu0 0.0
        %703 = vmatpush1.msra.mxu0 0.0
        %704 = vmatprep.subr.mxu0 0.0
        %705 = vmatpush1.msra.mxu0 0.0
        %706 = vmatprep.subr.mxu0 0.0
        %707 = vmatpush1.msra.mxu0 0.0
        %708 = vmatprep.subr.mxu0 0.0
        %709 = vmatpush1.msra.mxu0 0.0
        %710 = vmatprep.subr.mxu0 0.0
        %711 = vmatpush1.msra.mxu0 0.0
        %712 = vmatprep.subr.mxu0 0.0
        %713 = vmatpush1.msra.mxu0 0.0
        %714 = vmatprep.subr.mxu0 0.0
        %715 = vmatpush1.msra.mxu0 0.0
        %716 = vmatprep.subr.mxu0 0.0
        %717 = vmatpush1.msra.mxu0 0.0
        %718 = vmatprep.subr.mxu0 0.0
        %719 = vmatpush1.msra.mxu0 0.0
        %720 = vmatprep.subr.mxu0 0.0
        %721 = vmatpush1.msra.mxu0 0.0
        %722 = vmatprep.subr.mxu0 0.0
        %723 = vmatpush1.msra.mxu0 0.0
        %724 = vmatprep.subr.mxu0 0.0
        %725 = vmatpush1.msra.mxu0 0.0
        %726 = vmatprep.subr.mxu0 0.0
        %727 = vmatpush1.msra.mxu0 0.0
        %728 = vmatprep.subr.mxu0 0.0
        %729 = vmatpush1.msra.mxu0 0.0
        %730 = vmatprep.subr.mxu0 0.0
        %731 = vmatpush1.msra.mxu0 0.0
        %732 = vmatprep.subr.mxu0 0.0
        %733 = vmatpush1.msra.mxu0 0.0
        %734 = vmatprep.subr.mxu0 0.0
        %735 = vmatpush1.msra.mxu0 0.0
        %736 = vmatprep.subr.mxu0 0.0
        %737 = vmatpush1.msra.mxu0 0.0
        %738 = vmatprep.subr.mxu0 0.0
        %739 = vmatpush1.msra.mxu0 0.0
        %740 = vmatprep.subr.mxu0 0.0
        %741 = vmatpush1.msra.mxu0 0.0
        %742 = vmatprep.subr.mxu0 0.0
        %743 = vmatpush1.msra.mxu0 0.0
        %744 = vmatprep.mubr.f32.mxu0 0.0
        %745 = vmatmul.mubr.f32.gmra.mrb[0].mxu0 %v348
        %v746 = vpop.f32.mrb[0].mxu0
        %v747 = vadd.f32 0.0, %v746
        %v748 = vpop.f32.mrb[0].mxu0
        %749 = vmatprep.mubr.f32.mxu0 0.0
        %750 = vmatmul.mubr.f32.gmra.mrb[0].mxu0 %v351
        %v751 = vpop.f32.mrb[0].mxu0
        %v752 = vadd.f32 0.0, %v751
        %v753 = vpop.f32.mrb[0].mxu0
        %754 = vdwg.mxu0
        %s755 = scalar_lea.vmem [#allocation5], 16
        %v756 = vld [vmem:[%s755] sm:$0xff]
        %v757 = vld [vmem:[%s755 + $0x8] sm:$0xff]
        %v759 = vsel %vm514, %v756, 0
        %v762 = vsel %vm514, %v757, 0
        %764 = vmatprep.subr.mxu0 0.0
        %765 = vmatpush1.msra.mxu0 %v747
        %766 = vmatprep.subr.mxu0 0.0
        %767 = vmatpush1.msra.mxu0 %v752
        %768 = vmatprep.subr.mxu0 0.0
        %769 = vmatpush1.msra.mxu0 0.0
        %770 = vmatprep.subr.mxu0 0.0
        %771 = vmatpush1.msra.mxu0 0.0
        %772 = vmatprep.subr.mxu0 0.0
        %773 = vmatpush1.msra.mxu0 0.0
        %774 = vmatprep.subr.mxu0 0.0
        %775 = vmatpush1.msra.mxu0 0.0
        %776 = vmatprep.subr.mxu0 0.0
        %777 = vmatpush1.msra.mxu0 0.0
        %778 = vmatprep.subr.mxu0 0.0
        %779 = vmatpush1.msra.mxu0 0.0
        %780 = vmatprep.subr.mxu0 0.0
        %781 = vmatpush1.msra.mxu0 0.0
        %782 = vmatprep.subr.mxu0 0.0
        %783 = vmatpush1.msra.mxu0 0.0
        %784 = vmatprep.subr.mxu0 0.0
        %785 = vmatpush1.msra.mxu0 0.0
        %786 = vmatprep.subr.mxu0 0.0
        %787 = vmatpush1.msra.mxu0 0.0
        %788 = vmatprep.subr.mxu0 0.0
        %789 = vmatpush1.msra.mxu0 0.0
        %790 = vmatprep.subr.mxu0 0.0
        %791 = vmatpush1.msra.mxu0 0.0
        %792 = vmatprep.subr.mxu0 0.0
        %793 = vmatpush1.msra.mxu0 0.0
        %794 = vmatprep.subr.mxu0 0.0
        %795 = vmatpush1.msra.mxu0 0.0
        %796 = vmatprep.subr.mxu0 0.0
        %797 = vmatpush1.msra.mxu0 0.0
        %798 = vmatprep.subr.mxu0 0.0
        %799 = vmatpush1.msra.mxu0 0.0
        %800 = vmatprep.subr.mxu0 0.0
        %801 = vmatpush1.msra.mxu0 0.0
        %802 = vmatprep.subr.mxu0 0.0
        %803 = vmatpush1.msra.mxu0 0.0
        %804 = vmatprep.subr.mxu0 0.0
        %805 = vmatpush1.msra.mxu0 0.0
        %806 = vmatprep.subr.mxu0 0.0
        %807 = vmatpush1.msra.mxu0 0.0
        %808 = vmatprep.subr.mxu0 0.0
        %809 = vmatpush1.msra.mxu0 0.0
        %810 = vmatprep.subr.mxu0 0.0
        %811 = vmatpush1.msra.mxu0 0.0
        %812 = vmatprep.subr.mxu0 0.0
        %813 = vmatpush1.msra.mxu0 0.0
        %814 = vmatprep.subr.mxu0 0.0
        %815 = vmatpush1.msra.mxu0 0.0
        %816 = vmatprep.subr.mxu0 0.0
        %817 = vmatpush1.msra.mxu0 0.0
        %818 = vmatprep.subr.mxu0 0.0
        %819 = vmatpush1.msra.mxu0 0.0
        %820 = vmatprep.subr.mxu0 0.0
        %821 = vmatpush1.msra.mxu0 0.0
        %822 = vmatprep.subr.mxu0 0.0
        %823 = vmatpush1.msra.mxu0 0.0
        %824 = vmatprep.subr.mxu0 0.0
        %825 = vmatpush1.msra.mxu0 0.0
        %826 = vmatprep.subr.mxu0 0.0
        %827 = vmatpush1.msra.mxu0 0.0
        %828 = vmatprep.mubr.f32.mxu0 0.0
        %829 = vmatmul.mubr.f32.gmra.mrb[0].mxu0 %v759
        %v830 = vpop.f32.mrb[0].mxu0
        %v831 = vadd.f32 0.0, %v830
        %v832 = vpop.f32.mrb[0].mxu0
        %833 = vmatprep.mubr.f32.mxu0 0.0
        %834 = vmatmul.mubr.f32.gmra.mrb[0].mxu0 %v762
        %v835 = vpop.f32.mrb[0].mxu0
        %v836 = vadd.f32 0.0, %v835
        %v837 = vpop.f32.mrb[0].mxu0
        %838 = vdwg.mxu0
        %v839 = vadd.f32 %v669, %v831
        %v840 = vadd.f32 %v674, %v836
        %v841 = vld [vmem:[%s277] sm:$0xff]
        %v842 = vld [vmem:[%s277 + $0x8] sm:$0xff]
        %v844 = vlaneseq
        %v845 = vshrl.u32 %v844, 7
        %v846 = vsub.s32 0, %v845
        %v847 = vrot.slane %v338, %v846
        %v850 = vsel %vm514, %v841, 0
        %v853 = vsel %vm514, %v842, 0
        %855 = vmatprep.subr.mxu0 0.0
        %856 = vmatpush1.msra.mxu0 %v839
        %857 = vmatprep.subr.mxu0 0.0
        %858 = vmatpush1.msra.mxu0 %v840
        %859 = vmatprep.subr.mxu0 0.0
        %860 = vmatpush1.msra.mxu0 0.0
        %861 = vmatprep.subr.mxu0 0.0
        %862 = vmatpush1.msra.mxu0 0.0
        %863 = vmatprep.subr.mxu0 0.0
        %864 = vmatpush1.msra.mxu0 0.0
        %865 = vmatprep.subr.mxu0 0.0
        %866 = vmatpush1.msra.mxu0 0.0
        %867 = vmatprep.subr.mxu0 0.0
        %868 = vmatpush1.msra.mxu0 0.0
        %869 = vmatprep.subr.mxu0 0.0
        %870 = vmatpush1.msra.mxu0 0.0
        %871 = vmatprep.subr.mxu0 0.0
        %872 = vmatpush1.msra.mxu0 0.0
        %873 = vmatprep.subr.mxu0 0.0
        %874 = vmatpush1.msra.mxu0 0.0
        %875 = vmatprep.subr.mxu0 0.0
        %876 = vmatpush1.msra.mxu0 0.0
        %877 = vmatprep.subr.mxu0 0.0
        %878 = vmatpush1.msra.mxu0 0.0
        %879 = vmatprep.subr.mxu0 0.0
        %880 = vmatpush1.msra.mxu0 0.0
        %881 = vmatprep.subr.mxu0 0.0
        %882 = vmatpush1.msra.mxu0 0.0
        %883 = vmatprep.subr.mxu0 0.0
        %884 = vmatpush1.msra.mxu0 0.0
        %885 = vmatprep.subr.mxu0 0.0
        %886 = vmatpush1.msra.mxu0 0.0
        %887 = vmatprep.subr.mxu0 0.0
        %888 = vmatpush1.msra.mxu0 0.0
        %889 = vmatprep.subr.mxu0 0.0
        %890 = vmatpush1.msra.mxu0 0.0
        %891 = vmatprep.subr.mxu0 0.0
        %892 = vmatpush1.msra.mxu0 0.0
        %893 = vmatprep.subr.mxu0 0.0
        %894 = vmatpush1.msra.mxu0 0.0
        %895 = vmatprep.subr.mxu0 0.0
        %896 = vmatpush1.msra.mxu0 0.0
        %897 = vmatprep.subr.mxu0 0.0
        %898 = vmatpush1.msra.mxu0 0.0
        %899 = vmatprep.subr.mxu0 0.0
        %900 = vmatpush1.msra.mxu0 0.0
        %901 = vmatprep.subr.mxu0 0.0
        %902 = vmatpush1.msra.mxu0 0.0
        %903 = vmatprep.subr.mxu0 0.0
        %904 = vmatpush1.msra.mxu0 0.0
        %905 = vmatprep.subr.mxu0 0.0
        %906 = vmatpush1.msra.mxu0 0.0
        %907 = vmatprep.subr.mxu0 0.0
        %908 = vmatpush1.msra.mxu0 0.0
        %909 = vmatprep.subr.mxu0 0.0
        %910 = vmatpush1.msra.mxu0 0.0
        %911 = vmatprep.subr.mxu0 0.0
        %912 = vmatpush1.msra.mxu0 0.0
        %913 = vmatprep.subr.mxu0 0.0
        %914 = vmatpush1.msra.mxu0 0.0
        %915 = vmatprep.subr.mxu0 0.0
        %916 = vmatpush1.msra.mxu0 0.0
        %917 = vmatprep.subr.mxu0 0.0
        %918 = vmatpush1.msra.mxu0 0.0
        %919 = vmatprep.mubr.f32.mxu0 0.0
        %920 = vmatmul.mubr.f32.gmra.mrb[0].mxu0 %v850
        %v921 = vpop.f32.mrb[0].mxu0
        %v922 = vadd.f32 %v847, %v921
        %v923 = vpop.f32.mrb[0].mxu0
        %924 = vmatprep.mubr.f32.mxu0 0.0
        %925 = vmatmul.mubr.f32.gmra.mrb[0].mxu0 %v853
        %v926 = vpop.f32.mrb[0].mxu0
        %v927 = vadd.f32 %v847, %v926
        %v928 = vpop.f32.mrb[0].mxu0
        %929 = vdwg.mxu0
        %930 = vst [vmem:[%s321] sm:$0xff] %v922
        %931 = vst [vmem:[%s321 + $0x8] sm:$0xff] %v927
        %s932 = scalar_lea.vmem %s335, 16
        %v933 = vld [vmem:[%s932] sm:$0xff]
        %v934 = vld [vmem:[%s932 + $0x8] sm:$0xff]
        %v936 = vsel %vm346, %v933, 0
        %v939 = vsel %vm346, %v934, 0
        %941 = vmatprep.subr.mxu0 0.0
        %942 = vmatpush1.msra.mxu0 %v355
        %943 = vmatprep.subr.mxu0 0.0
        %944 = vmatpush1.msra.mxu0 0.0
        %945 = vmatprep.subr.mxu0 0.0
        %946 = vmatpush1.msra.mxu0 0.0
        %947 = vmatprep.subr.mxu0 0.0
        %948 = vmatpush1.msra.mxu0 0.0
        %949 = vmatprep.subr.mxu0 0.0
        %950 = vmatpush1.msra.mxu0 0.0
        %951 = vmatprep.subr.mxu0 0.0
        %952 = vmatpush1.msra.mxu0 0.0
        %953 = vmatprep.subr.mxu0 0.0
        %954 = vmatpush1.msra.mxu0 0.0
        %955 = vmatprep.subr.mxu0 0.0
        %956 = vmatpush1.msra.mxu0 0.0
        %957 = vmatprep.subr.mxu0 0.0
        %958 = vmatpush1.msra.mxu0 0.0
        %959 = vmatprep.subr.mxu0 0.0
        %960 = vmatpush1.msra.mxu0 0.0
        %961 = vmatprep.subr.mxu0 0.0
        %962 = vmatpush1.msra.mxu0 0.0
        %963 = vmatprep.subr.mxu0 0.0
        %964 = vmatpush1.msra.mxu0 0.0
        %965 = vmatprep.subr.mxu0 0.0
        %966 = vmatpush1.msra.mxu0 0.0
        %967 = vmatprep.subr.mxu0 0.0
        %968 = vmatpush1.msra.mxu0 0.0
        %969 = vmatprep.subr.mxu0 0.0
        %970 = vmatpush1.msra.mxu0 0.0
        %971 = vmatprep.subr.mxu0 0.0
        %972 = vmatpush1.msra.mxu0 0.0
        %973 = vmatprep.subr.mxu0 0.0
        %974 = vmatpush1.msra.mxu0 0.0
        %975 = vmatprep.subr.mxu0 0.0
        %976 = vmatpush1.msra.mxu0 0.0
        %977 = vmatprep.subr.mxu0 0.0
        %978 = vmatpush1.msra.mxu0 0.0
        %979 = vmatprep.subr.mxu0 0.0
        %980 = vmatpush1.msra.mxu0 0.0
        %981 = vmatprep.subr.mxu0 0.0
        %982 = vmatpush1.msra.mxu0 0.0
        %983 = vmatprep.subr.mxu0 0.0
        %984 = vmatpush1.msra.mxu0 0.0
        %985 = vmatprep.subr.mxu0 0.0
        %986 = vmatpush1.msra.mxu0 0.0
        %987 = vmatprep.subr.mxu0 0.0
        %988 = vmatpush1.msra.mxu0 0.0
        %989 = vmatprep.subr.mxu0 0.0
        %990 = vmatpush1.msra.mxu0 0.0
        %991 = vmatprep.subr.mxu0 0.0
        %992 = vmatpush1.msra.mxu0 0.0
        %993 = vmatprep.subr.mxu0 0.0
        %994 = vmatpush1.msra.mxu0 0.0
        %995 = vmatprep.subr.mxu0 0.0
        %996 = vmatpush1.msra.mxu0 0.0
        %997 = vmatprep.subr.mxu0 0.0
        %998 = vmatpush1.msra.mxu0 0.0
        %999 = vmatprep.subr.mxu0 0.0
        %1000 = vmatpush1.msra.mxu0 0.0
        %1001 = vmatprep.subr.mxu0 0.0
        %1002 = vmatpush1.msra.mxu0 0.0
        %1003 = vmatprep.subr.mxu0 0.0
        %1004 = vmatpush1.msra.mxu0 0.0
        %1005 = vmatprep.mubr.f32.mxu0 0.0
        %1006 = vmatmul.mubr.f32.gmra.mrb[0].mxu0 %v936
        %v1007 = vpop.f32.mrb[0].mxu0
        %v1008 = vadd.f32 0.0, %v1007
        %v1009 = vpop.f32.mrb[0].mxu0
        %1010 = vmatprep.mubr.f32.mxu0 0.0
        %1011 = vmatmul.mubr.f32.gmra.mrb[0].mxu0 %v939
        %v1012 = vpop.f32.mrb[0].mxu0
        %v1013 = vadd.f32 0.0, %v1012
        %v1014 = vpop.f32.mrb[0].mxu0
        %1015 = vdwg.mxu0
        %s1016 = scalar_lea.vmem %s327, 16
        %v1017 = vld [vmem:[%s1016] sm:$0xff]
        %v1018 = vld [vmem:[%s1016 + $0x8] sm:$0xff]
        %1019 = vmatprep.subr.mxu0 0.0
        %1020 = vmatpush1.msra.mxu0 %v435
        %1021 = vmatprep.subr.mxu0 0.0
        %1022 = vmatpush1.msra.mxu0 0.0
        %1023 = vmatprep.subr.mxu0 0.0
        %1024 = vmatpush1.msra.mxu0 0.0
        %1025 = vmatprep.subr.mxu0 0.0
        %1026 = vmatpush1.msra.mxu0 0.0
        %1027 = vmatprep.subr.mxu0 0.0
        %1028 = vmatpush1.msra.mxu0 0.0
        %1029 = vmatprep.subr.mxu0 0.0
        %1030 = vmatpush1.msra.mxu0 0.0
        %1031 = vmatprep.subr.mxu0 0.0
        %1032 = vmatpush1.msra.mxu0 0.0
        %1033 = vmatprep.subr.mxu0 0.0
        %1034 = vmatpush1.msra.mxu0 0.0
        %1035 = vmatprep.subr.mxu0 0.0
        %1036 = vmatpush1.msra.mxu0 0.0
        %1037 = vmatprep.subr.mxu0 0.0
        %1038 = vmatpush1.msra.mxu0 0.0
        %1039 = vmatprep.subr.mxu0 0.0
        %1040 = vmatpush1.msra.mxu0 0.0
        %1041 = vmatprep.subr.mxu0 0.0
        %1042 = vmatpush1.msra.mxu0 0.0
        %1043 = vmatprep.subr.mxu0 0.0
        %1044 = vmatpush1.msra.mxu0 0.0
        %1045 = vmatprep.subr.mxu0 0.0
        %1046 = vmatpush1.msra.mxu0 0.0
        %1047 = vmatprep.subr.mxu0 0.0
        %1048 = vmatpush1.msra.mxu0 0.0
        %1049 = vmatprep.subr.mxu0 0.0
        %1050 = vmatpush1.msra.mxu0 0.0
        %1051 = vmatprep.subr.mxu0 0.0
        %1052 = vmatpush1.msra.mxu0 0.0
        %1053 = vmatprep.subr.mxu0 0.0
        %1054 = vmatpush1.msra.mxu0 0.0
        %1055 = vmatprep.subr.mxu0 0.0
        %1056 = vmatpush1.msra.mxu0 0.0
        %1057 = vmatprep.subr.mxu0 0.0
        %1058 = vmatpush1.msra.mxu0 0.0
        %1059 = vmatprep.subr.mxu0 0.0
        %1060 = vmatpush1.msra.mxu0 0.0
        %1061 = vmatprep.subr.mxu0 0.0
        %1062 = vmatpush1.msra.mxu0 0.0
        %1063 = vmatprep.subr.mxu0 0.0
        %1064 = vmatpush1.msra.mxu0 0.0
        %1065 = vmatprep.subr.mxu0 0.0
        %1066 = vmatpush1.msra.mxu0 0.0
        %1067 = vmatprep.subr.mxu0 0.0
        %1068 = vmatpush1.msra.mxu0 0.0
        %1069 = vmatprep.subr.mxu0 0.0
        %1070 = vmatpush1.msra.mxu0 0.0
        %1071 = vmatprep.subr.mxu0 0.0
        %1072 = vmatpush1.msra.mxu0 0.0
        %1073 = vmatprep.subr.mxu0 0.0
        %1074 = vmatpush1.msra.mxu0 0.0
        %1075 = vmatprep.subr.mxu0 0.0
        %1076 = vmatpush1.msra.mxu0 0.0
        %1077 = vmatprep.subr.mxu0 0.0
        %1078 = vmatpush1.msra.mxu0 0.0
        %1079 = vmatprep.subr.mxu0 0.0
        %1080 = vmatpush1.msra.mxu0 0.0
        %1081 = vmatprep.subr.mxu0 0.0
        %1082 = vmatpush1.msra.mxu0 0.0
        %1083 = vmatprep.mubr.f32.mxu0 0.0
        %1084 = vmatmul.mubr.f32.gmra.mrb[0].mxu0 %v936
        %v1085 = vpop.f32.mrb[0].mxu0
        %v1086 = vadd.f32 0.0, %v1085
        %v1087 = vpop.f32.mrb[0].mxu0
        %1088 = vmatprep.mubr.f32.mxu0 0.0
        %1089 = vmatmul.mubr.f32.gmra.mrb[0].mxu0 %v939
        %v1090 = vpop.f32.mrb[0].mxu0
        %v1091 = vadd.f32 0.0, %v1090
        %v1092 = vpop.f32.mrb[0].mxu0
        %1093 = vdwg.mxu0
        %v1094 = vld [vmem:[#allocation5] sm:$0xff]
        %v1095 = vld [vmem:[#allocation5 + $0x8] sm:$0xff]
        %v1097 = vsel %vm514, %v1094, 0
        %v1100 = vsel %vm514, %v1095, 0
        %1102 = vmatprep.subr.mxu0 0.0
        %1103 = vmatpush1.msra.mxu0 %v1086
        %1104 = vmatprep.subr.mxu0 0.0
        %1105 = vmatpush1.msra.mxu0 %v1091
        %1106 = vmatprep.subr.mxu0 0.0
        %1107 = vmatpush1.msra.mxu0 0.0
        %1108 = vmatprep.subr.mxu0 0.0
        %1109 = vmatpush1.msra.mxu0 0.0
        %1110 = vmatprep.subr.mxu0 0.0
        %1111 = vmatpush1.msra.mxu0 0.0
        %1112 = vmatprep.subr.mxu0 0.0
        %1113 = vmatpush1.msra.mxu0 0.0
        %1114 = vmatprep.subr.mxu0 0.0
        %1115 = vmatpush1.msra.mxu0 0.0
        %1116 = vmatprep.subr.mxu0 0.0
        %1117 = vmatpush1.msra.mxu0 0.0
        %1118 = vmatprep.subr.mxu0 0.0
        %1119 = vmatpush1.msra.mxu0 0.0
        %1120 = vmatprep.subr.mxu0 0.0
        %1121 = vmatpush1.msra.mxu0 0.0
        %1122 = vmatprep.subr.mxu0 0.0
        %1123 = vmatpush1.msra.mxu0 0.0
        %1124 = vmatprep.subr.mxu0 0.0
        %1125 = vmatpush1.msra.mxu0 0.0
        %1126 = vmatprep.subr.mxu0 0.0
        %1127 = vmatpush1.msra.mxu0 0.0
        %1128 = vmatprep.subr.mxu0 0.0
        %1129 = vmatpush1.msra.mxu0 0.0
        %1130 = vmatprep.subr.mxu0 0.0
        %1131 = vmatpush1.msra.mxu0 0.0
        %1132 = vmatprep.subr.mxu0 0.0
        %1133 = vmatpush1.msra.mxu0 0.0
        %1134 = vmatprep.subr.mxu0 0.0
        %1135 = vmatpush1.msra.mxu0 0.0
        %1136 = vmatprep.subr.mxu0 0.0
        %1137 = vmatpush1.msra.mxu0 0.0
        %1138 = vmatprep.subr.mxu0 0.0
        %1139 = vmatpush1.msra.mxu0 0.0
        %1140 = vmatprep.subr.mxu0 0.0
        %1141 = vmatpush1.msra.mxu0 0.0
        %1142 = vmatprep.subr.mxu0 0.0
        %1143 = vmatpush1.msra.mxu0 0.0
        %1144 = vmatprep.subr.mxu0 0.0
        %1145 = vmatpush1.msra.mxu0 0.0
        %1146 = vmatprep.subr.mxu0 0.0
        %1147 = vmatpush1.msra.mxu0 0.0
        %1148 = vmatprep.subr.mxu0 0.0
        %1149 = vmatpush1.msra.mxu0 0.0
        %1150 = vmatprep.subr.mxu0 0.0
        %1151 = vmatpush1.msra.mxu0 0.0
        %1152 = vmatprep.subr.mxu0 0.0
        %1153 = vmatpush1.msra.mxu0 0.0
        %1154 = vmatprep.subr.mxu0 0.0
        %1155 = vmatpush1.msra.mxu0 0.0
        %1156 = vmatprep.subr.mxu0 0.0
        %1157 = vmatpush1.msra.mxu0 0.0
        %1158 = vmatprep.subr.mxu0 0.0
        %1159 = vmatpush1.msra.mxu0 0.0
        %1160 = vmatprep.subr.mxu0 0.0
        %1161 = vmatpush1.msra.mxu0 0.0
        %1162 = vmatprep.subr.mxu0 0.0
        %1163 = vmatpush1.msra.mxu0 0.0
        %1164 = vmatprep.subr.mxu0 0.0
        %1165 = vmatpush1.msra.mxu0 0.0
        %1166 = vmatprep.mubr.f32.mxu0 0.0
        %1167 = vmatmul.mubr.f32.gmra.mrb[0].mxu0 %v1097
        %v1168 = vpop.f32.mrb[0].mxu0
        %v1169 = vadd.f32 0.0, %v1168
        %v1170 = vpop.f32.mrb[0].mxu0
        %1171 = vmatprep.mubr.f32.mxu0 0.0
        %1172 = vmatmul.mubr.f32.gmra.mrb[0].mxu0 %v1100
        %v1173 = vpop.f32.mrb[0].mxu0
        %v1174 = vadd.f32 0.0, %v1173
        %v1175 = vpop.f32.mrb[0].mxu0
        %1176 = vdwg.mxu0
        %v1178 = vsel %vm514, %v1017, 0
        %v1181 = vsel %vm514, %v1018, 0
        %1183 = vmatprep.subr.mxu0 0.0
        %1184 = vmatpush1.msra.mxu0 %v1008
        %1185 = vmatprep.subr.mxu0 0.0
        %1186 = vmatpush1.msra.mxu0 %v1013
        %1187 = vmatprep.subr.mxu0 0.0
        %1188 = vmatpush1.msra.mxu0 0.0
        %1189 = vmatprep.subr.mxu0 0.0
        %1190 = vmatpush1.msra.mxu0 0.0
        %1191 = vmatprep.subr.mxu0 0.0
        %1192 = vmatpush1.msra.mxu0 0.0
        %1193 = vmatprep.subr.mxu0 0.0
        %1194 = vmatpush1.msra.mxu0 0.0
        %1195 = vmatprep.subr.mxu0 0.0
        %1196 = vmatpush1.msra.mxu0 0.0
        %1197 = vmatprep.subr.mxu0 0.0
        %1198 = vmatpush1.msra.mxu0 0.0
        %1199 = vmatprep.subr.mxu0 0.0
        %1200 = vmatpush1.msra.mxu0 0.0
        %1201 = vmatprep.subr.mxu0 0.0
        %1202 = vmatpush1.msra.mxu0 0.0
        %1203 = vmatprep.subr.mxu0 0.0
        %1204 = vmatpush1.msra.mxu0 0.0
        %1205 = vmatprep.subr.mxu0 0.0
        %1206 = vmatpush1.msra.mxu0 0.0
        %1207 = vmatprep.subr.mxu0 0.0
        %1208 = vmatpush1.msra.mxu0 0.0
        %1209 = vmatprep.subr.mxu0 0.0
        %1210 = vmatpush1.msra.mxu0 0.0
        %1211 = vmatprep.subr.mxu0 0.0
        %1212 = vmatpush1.msra.mxu0 0.0
        %1213 = vmatprep.subr.mxu0 0.0
        %1214 = vmatpush1.msra.mxu0 0.0
        %1215 = vmatprep.subr.mxu0 0.0
        %1216 = vmatpush1.msra.mxu0 0.0
        %1217 = vmatprep.subr.mxu0 0.0
        %1218 = vmatpush1.msra.mxu0 0.0
        %1219 = vmatprep.subr.mxu0 0.0
        %1220 = vmatpush1.msra.mxu0 0.0
        %1221 = vmatprep.subr.mxu0 0.0
        %1222 = vmatpush1.msra.mxu0 0.0
        %1223 = vmatprep.subr.mxu0 0.0
        %1224 = vmatpush1.msra.mxu0 0.0
        %1225 = vmatprep.subr.mxu0 0.0
        %1226 = vmatpush1.msra.mxu0 0.0
        %1227 = vmatprep.subr.mxu0 0.0
        %1228 = vmatpush1.msra.mxu0 0.0
        %1229 = vmatprep.subr.mxu0 0.0
        %1230 = vmatpush1.msra.mxu0 0.0
        %1231 = vmatprep.subr.mxu0 0.0
        %1232 = vmatpush1.msra.mxu0 0.0
        %1233 = vmatprep.subr.mxu0 0.0
        %1234 = vmatpush1.msra.mxu0 0.0
        %1235 = vmatprep.subr.mxu0 0.0
        %1236 = vmatpush1.msra.mxu0 0.0
        %1237 = vmatprep.subr.mxu0 0.0
        %1238 = vmatpush1.msra.mxu0 0.0
        %1239 = vmatprep.subr.mxu0 0.0
        %1240 = vmatpush1.msra.mxu0 0.0
        %1241 = vmatprep.subr.mxu0 0.0
        %1242 = vmatpush1.msra.mxu0 0.0
        %1243 = vmatprep.subr.mxu0 0.0
        %1244 = vmatpush1.msra.mxu0 0.0
        %1245 = vmatprep.subr.mxu0 0.0
        %1246 = vmatpush1.msra.mxu0 0.0
        %1247 = vmatprep.mubr.f32.mxu0 0.0
        %1248 = vmatmul.mubr.f32.gmra.mrb[0].mxu0 %v1178
        %v1249 = vpop.f32.mrb[0].mxu0
        %v1250 = vadd.f32 %v1169, %v1249
        %v1251 = vpop.f32.mrb[0].mxu0
        %1252 = vmatprep.mubr.f32.mxu0 0.0
        %1253 = vmatmul.mubr.f32.gmra.mrb[0].mxu0 %v1181
        %v1254 = vpop.f32.mrb[0].mxu0
        %v1255 = vadd.f32 %v1174, %v1254
        %v1256 = vpop.f32.mrb[0].mxu0
        %1257 = vdwg.mxu0
        %1258 = vmatprep.subr.mxu0 0.0
        %1259 = vmatpush1.msra.mxu0 %v678
        %1260 = vmatprep.subr.mxu0 0.0
        %1261 = vmatpush1.msra.mxu0 0.0
        %1262 = vmatprep.subr.mxu0 0.0
        %1263 = vmatpush1.msra.mxu0 0.0
        %1264 = vmatprep.subr.mxu0 0.0
        %1265 = vmatpush1.msra.mxu0 0.0
        %1266 = vmatprep.subr.mxu0 0.0
        %1267 = vmatpush1.msra.mxu0 0.0
        %1268 = vmatprep.subr.mxu0 0.0
        %1269 = vmatpush1.msra.mxu0 0.0
        %1270 = vmatprep.subr.mxu0 0.0
        %1271 = vmatpush1.msra.mxu0 0.0
        %1272 = vmatprep.subr.mxu0 0.0
        %1273 = vmatpush1.msra.mxu0 0.0
        %1274 = vmatprep.subr.mxu0 0.0
        %1275 = vmatpush1.msra.mxu0 0.0
        %1276 = vmatprep.subr.mxu0 0.0
        %1277 = vmatpush1.msra.mxu0 0.0
        %1278 = vmatprep.subr.mxu0 0.0
        %1279 = vmatpush1.msra.mxu0 0.0
        %1280 = vmatprep.subr.mxu0 0.0
        %1281 = vmatpush1.msra.mxu0 0.0
        %1282 = vmatprep.subr.mxu0 0.0
        %1283 = vmatpush1.msra.mxu0 0.0
        %1284 = vmatprep.subr.mxu0 0.0
        %1285 = vmatpush1.msra.mxu0 0.0
        %1286 = vmatprep.subr.mxu0 0.0
        %1287 = vmatpush1.msra.mxu0 0.0
        %1288 = vmatprep.subr.mxu0 0.0
        %1289 = vmatpush1.msra.mxu0 0.0
        %1290 = vmatprep.subr.mxu0 0.0
        %1291 = vmatpush1.msra.mxu0 0.0
        %1292 = vmatprep.subr.mxu0 0.0
        %1293 = vmatpush1.msra.mxu0 0.0
        %1294 = vmatprep.subr.mxu0 0.0
        %1295 = vmatpush1.msra.mxu0 0.0
        %1296 = vmatprep.subr.mxu0 0.0
        %1297 = vmatpush1.msra.mxu0 0.0
        %1298 = vmatprep.subr.mxu0 0.0
        %1299 = vmatpush1.msra.mxu0 0.0
        %1300 = vmatprep.subr.mxu0 0.0
        %1301 = vmatpush1.msra.mxu0 0.0
        %1302 = vmatprep.subr.mxu0 0.0
        %1303 = vmatpush1.msra.mxu0 0.0
        %1304 = vmatprep.subr.mxu0 0.0
        %1305 = vmatpush1.msra.mxu0 0.0
        %1306 = vmatprep.subr.mxu0 0.0
        %1307 = vmatpush1.msra.mxu0 0.0
        %1308 = vmatprep.subr.mxu0 0.0
        %1309 = vmatpush1.msra.mxu0 0.0
        %1310 = vmatprep.subr.mxu0 0.0
        %1311 = vmatpush1.msra.mxu0 0.0
        %1312 = vmatprep.subr.mxu0 0.0
        %1313 = vmatpush1.msra.mxu0 0.0
        %1314 = vmatprep.subr.mxu0 0.0
        %1315 = vmatpush1.msra.mxu0 0.0
        %1316 = vmatprep.subr.mxu0 0.0
        %1317 = vmatpush1.msra.mxu0 0.0
        %1318 = vmatprep.subr.mxu0 0.0
        %1319 = vmatpush1.msra.mxu0 0.0
        %1320 = vmatprep.subr.mxu0 0.0
        %1321 = vmatpush1.msra.mxu0 0.0
        %1322 = vmatprep.mubr.f32.mxu0 0.0
        %1323 = vmatmul.mubr.f32.gmra.mrb[0].mxu0 %v936
        %v1324 = vpop.f32.mrb[0].mxu0
        %v1325 = vadd.f32 0.0, %v1324
        %v1326 = vpop.f32.mrb[0].mxu0
        %1327 = vmatprep.mubr.f32.mxu0 0.0
        %1328 = vmatmul.mubr.f32.gmra.mrb[0].mxu0 %v939
        %v1329 = vpop.f32.mrb[0].mxu0
        %v1330 = vadd.f32 0.0, %v1329
        %v1331 = vpop.f32.mrb[0].mxu0
        %1332 = vdwg.mxu0
        %v1333 = vld [vmem:[%s755] sm:$0xff]
        %v1334 = vld [vmem:[%s755 + $0x8] sm:$0xff]
        %v1336 = vsel %vm514, %v1333, 0
        %v1339 = vsel %vm514, %v1334, 0
        %1341 = vmatprep.subr.mxu0 0.0
        %1342 = vmatpush1.msra.mxu0 %v1325
        %1343 = vmatprep.subr.mxu0 0.0
        %1344 = vmatpush1.msra.mxu0 %v1330
        %1345 = vmatprep.subr.mxu0 0.0
        %1346 = vmatpush1.msra.mxu0 0.0
        %1347 = vmatprep.subr.mxu0 0.0
        %1348 = vmatpush1.msra.mxu0 0.0
        %1349 = vmatprep.subr.mxu0 0.0
        %1350 = vmatpush1.msra.mxu0 0.0
        %1351 = vmatprep.subr.mxu0 0.0
        %1352 = vmatpush1.msra.mxu0 0.0
        %1353 = vmatprep.subr.mxu0 0.0
        %1354 = vmatpush1.msra.mxu0 0.0
        %1355 = vmatprep.subr.mxu0 0.0
        %1356 = vmatpush1.msra.mxu0 0.0
        %1357 = vmatprep.subr.mxu0 0.0
        %1358 = vmatpush1.msra.mxu0 0.0
        %1359 = vmatprep.subr.mxu0 0.0
        %1360 = vmatpush1.msra.mxu0 0.0
        %1361 = vmatprep.subr.mxu0 0.0
        %1362 = vmatpush1.msra.mxu0 0.0
        %1363 = vmatprep.subr.mxu0 0.0
        %1364 = vmatpush1.msra.mxu0 0.0
        %1365 = vmatprep.subr.mxu0 0.0
        %1366 = vmatpush1.msra.mxu0 0.0
        %1367 = vmatprep.subr.mxu0 0.0
        %1368 = vmatpush1.msra.mxu0 0.0
        %1369 = vmatprep.subr.mxu0 0.0
        %1370 = vmatpush1.msra.mxu0 0.0
        %1371 = vmatprep.subr.mxu0 0.0
        %1372 = vmatpush1.msra.mxu0 0.0
        %1373 = vmatprep.subr.mxu0 0.0
        %1374 = vmatpush1.msra.mxu0 0.0
        %1375 = vmatprep.subr.mxu0 0.0
        %1376 = vmatpush1.msra.mxu0 0.0
        %1377 = vmatprep.subr.mxu0 0.0
        %1378 = vmatpush1.msra.mxu0 0.0
        %1379 = vmatprep.subr.mxu0 0.0
        %1380 = vmatpush1.msra.mxu0 0.0
        %1381 = vmatprep.subr.mxu0 0.0
        %1382 = vmatpush1.msra.mxu0 0.0
        %1383 = vmatprep.subr.mxu0 0.0
        %1384 = vmatpush1.msra.mxu0 0.0
        %1385 = vmatprep.subr.mxu0 0.0
        %1386 = vmatpush1.msra.mxu0 0.0
        %1387 = vmatprep.subr.mxu0 0.0
        %1388 = vmatpush1.msra.mxu0 0.0
        %1389 = vmatprep.subr.mxu0 0.0
        %1390 = vmatpush1.msra.mxu0 0.0
        %1391 = vmatprep.subr.mxu0 0.0
        %1392 = vmatpush1.msra.mxu0 0.0
        %1393 = vmatprep.subr.mxu0 0.0
        %1394 = vmatpush1.msra.mxu0 0.0
        %1395 = vmatprep.subr.mxu0 0.0
        %1396 = vmatpush1.msra.mxu0 0.0
        %1397 = vmatprep.subr.mxu0 0.0
        %1398 = vmatpush1.msra.mxu0 0.0
        %1399 = vmatprep.subr.mxu0 0.0
        %1400 = vmatpush1.msra.mxu0 0.0
        %1401 = vmatprep.subr.mxu0 0.0
        %1402 = vmatpush1.msra.mxu0 0.0
        %1403 = vmatprep.subr.mxu0 0.0
        %1404 = vmatpush1.msra.mxu0 0.0
        %1405 = vmatprep.mubr.f32.mxu0 0.0
        %1406 = vmatmul.mubr.f32.gmra.mrb[0].mxu0 %v1336
        %v1407 = vpop.f32.mrb[0].mxu0
        %v1408 = vadd.f32 0.0, %v1407
        %v1409 = vpop.f32.mrb[0].mxu0
        %1410 = vmatprep.mubr.f32.mxu0 0.0
        %1411 = vmatmul.mubr.f32.gmra.mrb[0].mxu0 %v1339
        %v1412 = vpop.f32.mrb[0].mxu0
        %v1413 = vadd.f32 0.0, %v1412
        %v1414 = vpop.f32.mrb[0].mxu0
        %1415 = vdwg.mxu0
        %v1416 = vadd.f32 %v1250, %v1408
        %v1417 = vadd.f32 %v1255, %v1413
        %s1418 = scalar_lea.vmem %s277, 16 [#allocation2]
        %v1419 = vld [vmem:[%s1418] sm:$0xff]
        %v1420 = vld [vmem:[%s1418 + $0x8] sm:$0xff]
        %v1422 = vsel %vm514, %v1419, 0
        %v1425 = vsel %vm514, %v1420, 0
        %1427 = vmatprep.subr.mxu0 0.0
        %1428 = vmatpush1.msra.mxu0 %v1416
        %1429 = vmatprep.subr.mxu0 0.0
        %1430 = vmatpush1.msra.mxu0 %v1417
        %1431 = vmatprep.subr.mxu0 0.0
        %1432 = vmatpush1.msra.mxu0 0.0
        %1433 = vmatprep.subr.mxu0 0.0
        %1434 = vmatpush1.msra.mxu0 0.0
        %1435 = vmatprep.subr.mxu0 0.0
        %1436 = vmatpush1.msra.mxu0 0.0
        %1437 = vmatprep.subr.mxu0 0.0
        %1438 = vmatpush1.msra.mxu0 0.0
        %1439 = vmatprep.subr.mxu0 0.0
        %1440 = vmatpush1.msra.mxu0 0.0
        %1441 = vmatprep.subr.mxu0 0.0
        %1442 = vmatpush1.msra.mxu0 0.0
        %1443 = vmatprep.subr.mxu0 0.0
        %1444 = vmatpush1.msra.mxu0 0.0
        %1445 = vmatprep.subr.mxu0 0.0
        %1446 = vmatpush1.msra.mxu0 0.0
        %1447 = vmatprep.subr.mxu0 0.0
        %1448 = vmatpush1.msra.mxu0 0.0
        %1449 = vmatprep.subr.mxu0 0.0
        %1450 = vmatpush1.msra.mxu0 0.0
        %1451 = vmatprep.subr.mxu0 0.0
        %1452 = vmatpush1.msra.mxu0 0.0
        %1453 = vmatprep.subr.mxu0 0.0
        %1454 = vmatpush1.msra.mxu0 0.0
        %1455 = vmatprep.subr.mxu0 0.0
        %1456 = vmatpush1.msra.mxu0 0.0
        %1457 = vmatprep.subr.mxu0 0.0
        %1458 = vmatpush1.msra.mxu0 0.0
        %1459 = vmatprep.subr.mxu0 0.0
        %1460 = vmatpush1.msra.mxu0 0.0
        %1461 = vmatprep.subr.mxu0 0.0
        %1462 = vmatpush1.msra.mxu0 0.0
        %1463 = vmatprep.subr.mxu0 0.0
        %1464 = vmatpush1.msra.mxu0 0.0
        %1465 = vmatprep.subr.mxu0 0.0
        %1466 = vmatpush1.msra.mxu0 0.0
        %1467 = vmatprep.subr.mxu0 0.0
        %1468 = vmatpush1.msra.mxu0 0.0
        %1469 = vmatprep.subr.mxu0 0.0
        %1470 = vmatpush1.msra.mxu0 0.0
        %1471 = vmatprep.subr.mxu0 0.0
        %1472 = vmatpush1.msra.mxu0 0.0
        %1473 = vmatprep.subr.mxu0 0.0
        %1474 = vmatpush1.msra.mxu0 0.0
        %1475 = vmatprep.subr.mxu0 0.0
        %1476 = vmatpush1.msra.mxu0 0.0
        %1477 = vmatprep.subr.mxu0 0.0
        %1478 = vmatpush1.msra.mxu0 0.0
        %1479 = vmatprep.subr.mxu0 0.0
        %1480 = vmatpush1.msra.mxu0 0.0
        %1481 = vmatprep.subr.mxu0 0.0
        %1482 = vmatpush1.msra.mxu0 0.0
        %1483 = vmatprep.subr.mxu0 0.0
        %1484 = vmatpush1.msra.mxu0 0.0
        %1485 = vmatprep.subr.mxu0 0.0
        %1486 = vmatpush1.msra.mxu0 0.0
        %1487 = vmatprep.subr.mxu0 0.0
        %1488 = vmatpush1.msra.mxu0 0.0
        %1489 = vmatprep.subr.mxu0 0.0
        %1490 = vmatpush1.msra.mxu0 0.0
        %1491 = vmatprep.mubr.f32.mxu0 0.0
        %1492 = vmatmul.mubr.f32.gmra.mrb[0].mxu0 %v1422
        %v1493 = vpop.f32.mrb[0].mxu0
        %v1494 = vadd.f32 %v847, %v1493
        %v1495 = vpop.f32.mrb[0].mxu0
        %1496 = vmatprep.mubr.f32.mxu0 0.0
        %1497 = vmatmul.mubr.f32.gmra.mrb[0].mxu0 %v1425
        %v1498 = vpop.f32.mrb[0].mxu0
        %v1499 = vadd.f32 %v847, %v1498
        %v1500 = vpop.f32.mrb[0].mxu0
        %1501 = vdwg.mxu0
        %s1502 = scalar_lea.vmem %s321, 16 [#allocation7]
        %1503 = vst [vmem:[%s1502] sm:$0xff] %v1494
        %1504 = vst [vmem:[%s1502 + $0x8] sm:$0xff] %v1499
        %s1505 = sand.u32 %s173, 1
        %s1506 = scalar_lea.sflag [#allocation4], %s1505
        %s1507 = sand.u32 %s173, 1
        %s1508 = smul.addr %s1507, 32
        %s1509 = scalar_lea.vmem [#allocation7], %s1508
        // Predicated region
        $region53: #{tpu_custom_call.1} parent=43 // pred_check
          %p1510 = pneg %p183
        $region54: #{tpu_custom_call.1} parent=43 // pred_check_branch
          %1512 = sbr.rel (%p1510) target = $region56
        $region55: #{tpu_custom_call.1} parent=43 // pred_region
          %s1513 = smul.u32 2, %s24
          %s1515 = ssub.s32 512, 512
          %1516 = vsyncadd %s1506, %s1515
          %s1517 = smul.addr %s1513, 2
          %s1518 = smul.addr %s1517, 128
          %s1519 = scalar_lea.hbm %s6, %s1518
          %s1520 = sshll.u32 %s1509, 4
          %s1521 = int_to_ptr.vmem [resolvable:$true] %s1520
          %1526 = dma.vmem_to_hbm [thread:$0]  %s1521, 512, %s1519, %s1506, 128, 128, 8
        $region56: #{tpu_custom_call.1} parent=43 // pred_fallthru
          _
      $region44: #{tpu_custom_call.1} parent=5 // pred_fallthru
        _
      %p1527 = scmp.le.s32.totalorder 2, %s19
      // Predicated region
      $region57: #{tpu_custom_call.1} parent=5 // pred_check
        %p1528 = pneg %p1527
      $region58: #{tpu_custom_call.1} parent=5 // pred_check_branch
        %1530 = sbr.rel (%p1528) target = $region60
      $region59: #{tpu_custom_call.1} parent=5 // pred_region
        %s1531 = ssub.s32 %s19, 2
        // Predicated region
        $region61: #{tpu_custom_call.1} parent=59 // pred_check
          %p1532 = pneg %p189
        $region62: #{tpu_custom_call.1} parent=59 // pred_check_branch
          %1534 = sbr.rel (%p1532) target = $region64
        $region63: #{tpu_custom_call.1} parent=59 // pred_region
          %s1535 = sand.u32 %s174, 1
          %s1536 = scalar_lea.sflag [#allocation4], %s1535
          %s1537 = sand.u32 %s174, 1
          %s1538 = smul.addr %s1537, 32
          %s1539 = scalar_lea.vmem [#allocation7], %s1538
          %1540 = dma.done %s1536, 512
        $region64: #{tpu_custom_call.1} parent=59 // pred_fallthru
          _
      $region60: #{tpu_custom_call.1} parent=5 // pred_fallthru
        _
    $region6: #{tpu_custom_call.1} parent=1 // loop_footer
      %s23 = sadd.s32 1, %s19
    $region7: #{tpu_custom_call.1} parent=1 // loop_footer_branch
      %18 = sbr.rel target = $region3
    $region8: #{tpu_custom_call.1} parent=1 // loop_exit
      _
    %1541 = vsyncpa [#allocation3], 1
    %s1542 = scalar_lea.sflag [#allocation3], 1
    %1543 = vsyncpa %s1542, 1
    %1544 = vsyncpa [#allocation6], 1
    %1545 = vsyncpa [#allocation4], 1
    %s1546 = scalar_lea.sflag [#allocation4], 1
    %1547 = vsyncpa %s1546, 1

</llo_original>
